<compile_context>
chip_gen: v7x
topology: tpu7x:2x2x1
jax: 0.10.0
libtpu: 0.0.40
codegen_flags: <defaults>
</compile_context>

<pallas_src>
import jax
import jax.numpy as jnp
from jax.experimental import pallas as pl
from jax.experimental.pallas import tpu as pltpu

# ----------------- module configuration (mirrors __init__ args) -------------
RADIUS = 0.75
NSAMPLE = 8
IN_CHANNEL = 4
MLP = [32, 32]
MLP2 = [32, 32]
BN_EPS = 1e-5
LANE = 128


# ----------------------------- JAX glue --------------------------------------
def ball_query(xyz_t, radius, nsample):
    """xyz_t: (B, N, 3) -> idx (B, N, nsample). pointnet2 ball_query semantics:
    first `nsample` indices (in index order) within the radius, padded with the
    first found index."""
    B, N, _ = xyz_t.shape
    d2 = jnp.sum((xyz_t[:, :, None, :] - xyz_t[:, None, :, :]) ** 2, axis=-1)
    in_ball = d2 <= radius ** 2
    ar = jnp.arange(N, dtype=jnp.int32)
    cand = jnp.where(in_ball, ar[None, None, :], N)
    cand = jnp.sort(cand, axis=-1)[..., :nsample]
    first = cand[..., :1]
    idx = jnp.where(cand == N, first, cand)
    idx = jnp.where(idx == N, 0, idx)  # only reachable if ball is empty (never: self dist 0)
    return idx.astype(jnp.int32)


def query_and_group(xyz_t, points, radius, nsample):
    """Replicates pointutils.QueryAndGroup(radius, nsample) with use_xyz=True.
    xyz_t: (B, N, 3); points: (B, C, N) -> (B, N, nsample, 3 + C)."""
    # TODO(synk): for large N the O(N^2) ball query + dense gather dominates
    # end-to-end time; replace with a tiled PrefetchScalarGridSpec gather kernel.
    idx = ball_query(xyz_t, radius, nsample)
    gather = jax.vmap(lambda f, i: f[i])  # (N, D), (N, S) -> (N, S, D)
    grouped_xyz = gather(xyz_t, idx) - xyz_t[:, :, None, :]        # relative xyz
    grouped_pts = gather(jnp.transpose(points, (0, 2, 1)), idx)    # features
    return jnp.concatenate([grouped_xyz, grouped_pts], axis=-1)


# ----------------------------- Pallas kernel ---------------------------------
def make_kernel(nsample, n_mlp, n_mlp2):
    def kernel(x_ref, *refs):
        out_ref = refs[-1]
        prm = [r[...] for r in refs[:-1]]   # small grid-invariant weights/biases
        # Stage 1 mlp applied per neighbor; running max across the neighbors.
        pooled = None
        for s in range(nsample):
            h = x_ref[s]                                          # (K_pad, tile)
            for l in range(n_mlp):
                w, b = prm[2 * l], prm[2 * l + 1]                 # (C,Cin), (C,1)
                h = jnp.maximum(
                    jnp.dot(w, h, preferred_element_type=jnp.float32) + b, 0.0)
            pooled = h if pooled is None else jnp.maximum(pooled, h)
        # Stage 2 mlp on the pooled per-point features.
        h = pooled
        for l in range(n_mlp2):
            w, b = prm[2 * (n_mlp + l)], prm[2 * (n_mlp + l) + 1]
            h = jnp.maximum(
                jnp.dot(w, h, preferred_element_type=jnp.float32) + b, 0.0)
        out_ref[...] = h.astype(out_ref.dtype)                    # (C_out, tile)
    return kernel


def point_local_feature(xyz, points, params, *, radius=RADIUS, nsample=NSAMPLE,
                        tile_points=4096):
    """xyz: (B, 3, N), points: (B, C_in, N) -> (B, mlp2[-1], N)."""
    B, _, N = xyz.shape
    xyz_t = jnp.transpose(xyz, (0, 2, 1))
    grouped = query_and_group(xyz_t, points, radius, nsample)   # (B, N, S, K)
    K = grouped.shape[-1]
    P = B * N

    # Lane-dense layout: (nsample, K_pad, P_pad); channels on sublanes, points
    # on lanes. Pad the point axis so any P works with large tiles.
    K_pad = ((K + 7) // 8) * 8
    P0 = ((P + LANE - 1) // LANE) * LANE
    tpc = min(int(tile_points), P0)
    tpc = ((tpc + LANE - 1) // LANE) * LANE
    P_pad = ((P0 + tpc - 1) // tpc) * tpc

    x = jnp.transpose(grouped, (2, 3, 0, 1)).reshape(nsample, K, P)
    x = jnp.pad(x, ((0, 0), (0, K_pad - K), (0, P_pad - P))).astype(jnp.float32)

    mlp_params, mlp2_params = params
    c_out = mlp2_params[-1][0].shape[1]

    # Fold BN scale into the conv weight (w' = w * s), transpose to (C_out, C_in),
    # keep the bias as a (C_out, 1) column for a broadcast add over lanes.
    flat_params = []
    in_specs = [pl.BlockSpec((nsample, K_pad, tpc), lambda i: (0, 0, i))]
    for li, (w, s, b) in enumerate(mlp_params + mlp2_params):
        wt = (w * s).T                                       # (c_out, c_in)
        if li == 0:
            wt = jnp.pad(wt, ((0, 0), (0, K_pad - K)))       # pad contraction dim
        bc = b.reshape(-1, 1)                                # (c_out, 1)
        flat_params += [wt.astype(jnp.float32), bc.astype(jnp.float32)]
        in_specs += [pl.BlockSpec(wt.shape, lambda i: (0, 0)),
                     pl.BlockSpec(bc.shape, lambda i: (0, 0))]

    kernel = make_kernel(nsample, len(mlp_params), len(mlp2_params))
    out = pl.pallas_call(
        kernel,
        out_shape=jax.ShapeDtypeStruct((c_out, P_pad), jnp.float32),
        grid=(P_pad // tpc,),
        in_specs=in_specs,
        out_specs=pl.BlockSpec((c_out, tpc), lambda i: (0, i)),
        compiler_params=pltpu.CompilerParams(
            dimension_semantics=("parallel",),
            vmem_limit_bytes=32 * 1024 * 1024),
    )(x, *flat_params)

    out = out[:, :P].reshape(c_out, B, N)                    # (C_out, B, N)
    return jnp.transpose(out, (1, 0, 2))                     # (B, C_out, N)


# ------------------------ deterministic parameter init -----------------------
def init_params(key, in_channel, mlp, mlp2):
    """Conv2d(1x1, no bias) weights + eval-mode BatchNorm2d folded into
    per-channel scale/bias. All initialized deterministically."""
    def layer(k, cin, cout):
        k1, k2, k3, k4, k5 = jax.random.split(k, 5)
        w = jax.random.normal(k1, (cin, cout), jnp.float32) / jnp.sqrt(float(cin))
        gamma = 1.0 + 0.1 * jax.random.normal(k2, (cout,), jnp.float32)
        beta = 0.1 * jax.random.normal(k3, (cout,), jnp.float32)
        mean = 0.1 * jax.random.normal(k4, (cout,), jnp.float32)
        var = 1.0 + 0.1 * jax.random.uniform(k5, (cout,), jnp.float32)
        scale = gamma / jnp.sqrt(var + BN_EPS)
        bias = beta - mean * scale
        return (w, scale.reshape(1, cout), bias.reshape(1, cout))

    keys = jax.random.split(key, len(mlp) + len(mlp2))
    params1, params2 = [], []
    last, ki = in_channel + 3, 0
    for c in mlp:
        params1.append(layer(keys[ki], last, c)); last = c; ki += 1
    last = mlp[-1]
    for c in mlp2:
        params2.append(layer(keys[ki], last, c)); last = c; ki += 1
    return params1, params2


# ------------------------------ pure-JAX reference ---------------------------
def reference(xyz, points, params):
    xyz_t = jnp.transpose(xyz, (0, 2, 1))
    h = query_and_group(xyz_t, points, RADIUS, NSAMPLE)   # (B, N, S, K)
    for w, s, b in params[0]:
        h = jnp.maximum(h @ w * s + b, 0.0)
    h = jnp.max(h, axis=2)                                # (B, N, C)
    for w, s, b in params[1]:
        h = jnp.maximum(h @ w * s + b, 0.0)
    return jnp.transpose(h, (0, 2, 1))                    # (B, C_out, N)


if __name__ == "__main__":
    key = jax.random.PRNGKey(0)
    kx, kp, kw = jax.random.split(key, 3)
    B, N = 2, 16
    xyz = jax.random.normal(kx, (B, 3, N), jnp.float32)
    points = jax.random.normal(kp, (B, IN_CHANNEL, N), jnp.float32)
    params = init_params(kw, IN_CHANNEL, MLP, MLP2)

    out = point_local_feature(xyz, points, params)
    out = jax.block_until_ready(out)

    ref = reference(xyz, points, params)
    assert out.shape == (B, MLP2[-1], N), out.shape
    assert bool(jnp.allclose(out, ref, atol=1e-3, rtol=1e-3)), "mismatch vs reference"
    print("KERNEL_OK")
</pallas_src>

<mosaic_0001>
module attributes {stable_mosaic.version = 11 : i64} {
  func.func @kernel(%arg0: i32, %arg1: memref<8x8x128xf32, #tpu.memory_space<vmem>>, %arg2: memref<32x8xf32, #tpu.memory_space<vmem>>, %arg3: memref<32x1xf32, #tpu.memory_space<vmem>>, %arg4: memref<32x32xf32, #tpu.memory_space<vmem>>, %arg5: memref<32x1xf32, #tpu.memory_space<vmem>>, %arg6: memref<32x32xf32, #tpu.memory_space<vmem>>, %arg7: memref<32x1xf32, #tpu.memory_space<vmem>>, %arg8: memref<32x32xf32, #tpu.memory_space<vmem>>, %arg9: memref<32x1xf32, #tpu.memory_space<vmem>>, %arg10: memref<32x128xf32, #tpu.memory_space<vmem>>) attributes {dimension_semantics = [#tpu.dimension_semantics<parallel>], iteration_bounds = array<i64: 1>, scalar_prefetch = 0 : i64, scratch_operands = 0 : i64, tpu.core_type = #tpu.core_type<tc>, window_params = [{transform_indices = @transform_0, window_bounds = array<i64: 8, 8, 128>}, {pipeline_mode = #tpu.pipeline_mode<synchronous>, transform_indices = @transform_1, window_bounds = array<i64: 32, 8>}, {pipeline_mode = #tpu.pipeline_mode<synchronous>, transform_indices = @transform_2, window_bounds = array<i64: 32, 1>}, {pipeline_mode = #tpu.pipeline_mode<synchronous>, transform_indices = @transform_3, window_bounds = array<i64: 32, 32>}, {pipeline_mode = #tpu.pipeline_mode<synchronous>, transform_indices = @transform_4, window_bounds = array<i64: 32, 1>}, {pipeline_mode = #tpu.pipeline_mode<synchronous>, transform_indices = @transform_5, window_bounds = array<i64: 32, 32>}, {pipeline_mode = #tpu.pipeline_mode<synchronous>, transform_indices = @transform_6, window_bounds = array<i64: 32, 1>}, {pipeline_mode = #tpu.pipeline_mode<synchronous>, transform_indices = @transform_7, window_bounds = array<i64: 32, 32>}, {pipeline_mode = #tpu.pipeline_mode<synchronous>, transform_indices = @transform_8, window_bounds = array<i64: 32, 1>}, {transform_indices = @transform_9, window_bounds = array<i64: 32, 128>}]} {
    %c0 = arith.constant 0 : index
    %c0_0 = arith.constant 0 : index
    %0 = vector.load %arg2[%c0, %c0_0] : memref<32x8xf32, #tpu.memory_space<vmem>>, vector<32x8xf32>
    %c0_1 = arith.constant 0 : index
    %c0_2 = arith.constant 0 : index
    %1 = vector.load %arg3[%c0_1, %c0_2] : memref<32x1xf32, #tpu.memory_space<vmem>>, vector<32x1xf32>
    %c0_3 = arith.constant 0 : index
    %c0_4 = arith.constant 0 : index
    %2 = vector.load %arg4[%c0_3, %c0_4] : memref<32x32xf32, #tpu.memory_space<vmem>>, vector<32x32xf32>
    %c0_5 = arith.constant 0 : index
    %c0_6 = arith.constant 0 : index
    %3 = vector.load %arg5[%c0_5, %c0_6] : memref<32x1xf32, #tpu.memory_space<vmem>>, vector<32x1xf32>
    %c0_7 = arith.constant 0 : index
    %c0_8 = arith.constant 0 : index
    %4 = vector.load %arg6[%c0_7, %c0_8] : memref<32x32xf32, #tpu.memory_space<vmem>>, vector<32x32xf32>
    %c0_9 = arith.constant 0 : index
    %c0_10 = arith.constant 0 : index
    %5 = vector.load %arg7[%c0_9, %c0_10] : memref<32x1xf32, #tpu.memory_space<vmem>>, vector<32x1xf32>
    %c0_11 = arith.constant 0 : index
    %c0_12 = arith.constant 0 : index
    %6 = vector.load %arg8[%c0_11, %c0_12] : memref<32x32xf32, #tpu.memory_space<vmem>>, vector<32x32xf32>
    %c0_13 = arith.constant 0 : index
    %c0_14 = arith.constant 0 : index
    %7 = vector.load %arg9[%c0_13, %c0_14] : memref<32x1xf32, #tpu.memory_space<vmem>>, vector<32x1xf32>
    %c0_15 = arith.constant 0 : index
    %c0_16 = arith.constant 0 : index
    %c0_17 = arith.constant 0 : index
    %8 = vector.load %arg1[%c0_15, %c0_16, %c0_17] : memref<8x8x128xf32, #tpu.memory_space<vmem>>, vector<1x8x128xf32>
    %9 = vector.shape_cast %8 : vector<1x8x128xf32> to vector<8x128xf32>
    %cst = arith.constant dense<0.000000e+00> : vector<32x128xf32>
    %10 = tpu.matmul %0, %9, %cst {dimension_numbers = #tpu.dot_dimension_numbers<[1], [0], [0], [1], [0, 0, 1, 1], [], []>} : vector<32x8xf32>, vector<8x128xf32>, vector<32x128xf32> -> vector<32x128xf32>
    %11 = vector.broadcast %1 : vector<32x1xf32> to vector<32x128xf32>
    %12 = arith.addf %10, %11 : vector<32x128xf32>
    %cst_18 = arith.constant 0.000000e+00 : f32
    %13 = vector.broadcast %cst_18 : f32 to vector<32x128xf32>
    %14 = arith.maximumf %12, %13 : vector<32x128xf32>
    %cst_19 = arith.constant dense<0.000000e+00> : vector<32x128xf32>
    %15 = tpu.matmul %2, %14, %cst_19 {dimension_numbers = #tpu.dot_dimension_numbers<[1], [0], [0], [1], [0, 0, 1, 1], [], []>} : vector<32x32xf32>, vector<32x128xf32>, vector<32x128xf32> -> vector<32x128xf32>
    %16 = vector.broadcast %3 : vector<32x1xf32> to vector<32x128xf32>
    %17 = arith.addf %15, %16 : vector<32x128xf32>
    %cst_20 = arith.constant 0.000000e+00 : f32
    %18 = vector.broadcast %cst_20 : f32 to vector<32x128xf32>
    %19 = arith.maximumf %17, %18 : vector<32x128xf32>
    %c1 = arith.constant 1 : index
    %c0_21 = arith.constant 0 : index
    %c0_22 = arith.constant 0 : index
    %20 = vector.load %arg1[%c1, %c0_21, %c0_22] : memref<8x8x128xf32, #tpu.memory_space<vmem>>, vector<1x8x128xf32>
    %21 = vector.shape_cast %20 : vector<1x8x128xf32> to vector<8x128xf32>
    %cst_23 = arith.constant dense<0.000000e+00> : vector<32x128xf32>
    %22 = tpu.matmul %0, %21, %cst_23 {dimension_numbers = #tpu.dot_dimension_numbers<[1], [0], [0], [1], [0, 0, 1, 1], [], []>} : vector<32x8xf32>, vector<8x128xf32>, vector<32x128xf32> -> vector<32x128xf32>
    %23 = vector.broadcast %1 : vector<32x1xf32> to vector<32x128xf32>
    %24 = arith.addf %22, %23 : vector<32x128xf32>
    %cst_24 = arith.constant 0.000000e+00 : f32
    %25 = vector.broadcast %cst_24 : f32 to vector<32x128xf32>
    %26 = arith.maximumf %24, %25 : vector<32x128xf32>
    %cst_25 = arith.constant dense<0.000000e+00> : vector<32x128xf32>
    %27 = tpu.matmul %2, %26, %cst_25 {dimension_numbers = #tpu.dot_dimension_numbers<[1], [0], [0], [1], [0, 0, 1, 1], [], []>} : vector<32x32xf32>, vector<32x128xf32>, vector<32x128xf32> -> vector<32x128xf32>
    %28 = vector.broadcast %3 : vector<32x1xf32> to vector<32x128xf32>
    %29 = arith.addf %27, %28 : vector<32x128xf32>
    %cst_26 = arith.constant 0.000000e+00 : f32
    %30 = vector.broadcast %cst_26 : f32 to vector<32x128xf32>
    %31 = arith.maximumf %29, %30 : vector<32x128xf32>
    %32 = arith.maximumf %19, %31 : vector<32x128xf32>
    %c2 = arith.constant 2 : index
    %c0_27 = arith.constant 0 : index
    %c0_28 = arith.constant 0 : index
    %33 = vector.load %arg1[%c2, %c0_27, %c0_28] : memref<8x8x128xf32, #tpu.memory_space<vmem>>, vector<1x8x128xf32>
    %34 = vector.shape_cast %33 : vector<1x8x128xf32> to vector<8x128xf32>
    %cst_29 = arith.constant dense<0.000000e+00> : vector<32x128xf32>
    %35 = tpu.matmul %0, %34, %cst_29 {dimension_numbers = #tpu.dot_dimension_numbers<[1], [0], [0], [1], [0, 0, 1, 1], [], []>} : vector<32x8xf32>, vector<8x128xf32>, vector<32x128xf32> -> vector<32x128xf32>
    %36 = vector.broadcast %1 : vector<32x1xf32> to vector<32x128xf32>
    %37 = arith.addf %35, %36 : vector<32x128xf32>
    %cst_30 = arith.constant 0.000000e+00 : f32
    %38 = vector.broadcast %cst_30 : f32 to vector<32x128xf32>
    %39 = arith.maximumf %37, %38 : vector<32x128xf32>
    %cst_31 = arith.constant dense<0.000000e+00> : vector<32x128xf32>
    %40 = tpu.matmul %2, %39, %cst_31 {dimension_numbers = #tpu.dot_dimension_numbers<[1], [0], [0], [1], [0, 0, 1, 1], [], []>} : vector<32x32xf32>, vector<32x128xf32>, vector<32x128xf32> -> vector<32x128xf32>
    %41 = vector.broadcast %3 : vector<32x1xf32> to vector<32x128xf32>
    %42 = arith.addf %40, %41 : vector<32x128xf32>
    %cst_32 = arith.constant 0.000000e+00 : f32
    %43 = vector.broadcast %cst_32 : f32 to vector<32x128xf32>
    %44 = arith.maximumf %42, %43 : vector<32x128xf32>
    %45 = arith.maximumf %32, %44 : vector<32x128xf32>
    %c3 = arith.constant 3 : index
    %c0_33 = arith.constant 0 : index
    %c0_34 = arith.constant 0 : index
    %46 = vector.load %arg1[%c3, %c0_33, %c0_34] : memref<8x8x128xf32, #tpu.memory_space<vmem>>, vector<1x8x128xf32>
    %47 = vector.shape_cast %46 : vector<1x8x128xf32> to vector<8x128xf32>
    %cst_35 = arith.constant dense<0.000000e+00> : vector<32x128xf32>
    %48 = tpu.matmul %0, %47, %cst_35 {dimension_numbers = #tpu.dot_dimension_numbers<[1], [0], [0], [1], [0, 0, 1, 1], [], []>} : vector<32x8xf32>, vector<8x128xf32>, vector<32x128xf32> -> vector<32x128xf32>
    %49 = vector.broadcast %1 : vector<32x1xf32> to vector<32x128xf32>
    %50 = arith.addf %48, %49 : vector<32x128xf32>
    %cst_36 = arith.constant 0.000000e+00 : f32
    %51 = vector.broadcast %cst_36 : f32 to vector<32x128xf32>
    %52 = arith.maximumf %50, %51 : vector<32x128xf32>
    %cst_37 = arith.constant dense<0.000000e+00> : vector<32x128xf32>
    %53 = tpu.matmul %2, %52, %cst_37 {dimension_numbers = #tpu.dot_dimension_numbers<[1], [0], [0], [1], [0, 0, 1, 1], [], []>} : vector<32x32xf32>, vector<32x128xf32>, vector<32x128xf32> -> vector<32x128xf32>
    %54 = vector.broadcast %3 : vector<32x1xf32> to vector<32x128xf32>
    %55 = arith.addf %53, %54 : vector<32x128xf32>
    %cst_38 = arith.constant 0.000000e+00 : f32
    %56 = vector.broadcast %cst_38 : f32 to vector<32x128xf32>
    %57 = arith.maximumf %55, %56 : vector<32x128xf32>
    %58 = arith.maximumf %45, %57 : vector<32x128xf32>
    %c4 = arith.constant 4 : index
    %c0_39 = arith.constant 0 : index
    %c0_40 = arith.constant 0 : index
    %59 = vector.load %arg1[%c4, %c0_39, %c0_40] : memref<8x8x128xf32, #tpu.memory_space<vmem>>, vector<1x8x128xf32>
    %60 = vector.shape_cast %59 : vector<1x8x128xf32> to vector<8x128xf32>
    %cst_41 = arith.constant dense<0.000000e+00> : vector<32x128xf32>
    %61 = tpu.matmul %0, %60, %cst_41 {dimension_numbers = #tpu.dot_dimension_numbers<[1], [0], [0], [1], [0, 0, 1, 1], [], []>} : vector<32x8xf32>, vector<8x128xf32>, vector<32x128xf32> -> vector<32x128xf32>
    %62 = vector.broadcast %1 : vector<32x1xf32> to vector<32x128xf32>
    %63 = arith.addf %61, %62 : vector<32x128xf32>
    %cst_42 = arith.constant 0.000000e+00 : f32
    %64 = vector.broadcast %cst_42 : f32 to vector<32x128xf32>
    %65 = arith.maximumf %63, %64 : vector<32x128xf32>
    %cst_43 = arith.constant dense<0.000000e+00> : vector<32x128xf32>
    %66 = tpu.matmul %2, %65, %cst_43 {dimension_numbers = #tpu.dot_dimension_numbers<[1], [0], [0], [1], [0, 0, 1, 1], [], []>} : vector<32x32xf32>, vector<32x128xf32>, vector<32x128xf32> -> vector<32x128xf32>
    %67 = vector.broadcast %3 : vector<32x1xf32> to vector<32x128xf32>
    %68 = arith.addf %66, %67 : vector<32x128xf32>
    %cst_44 = arith.constant 0.000000e+00 : f32
    %69 = vector.broadcast %cst_44 : f32 to vector<32x128xf32>
    %70 = arith.maximumf %68, %69 : vector<32x128xf32>
    %71 = arith.maximumf %58, %70 : vector<32x128xf32>
    %c5 = arith.constant 5 : index
    %c0_45 = arith.constant 0 : index
    %c0_46 = arith.constant 0 : index
    %72 = vector.load %arg1[%c5, %c0_45, %c0_46] : memref<8x8x128xf32, #tpu.memory_space<vmem>>, vector<1x8x128xf32>
    %73 = vector.shape_cast %72 : vector<1x8x128xf32> to vector<8x128xf32>
    %cst_47 = arith.constant dense<0.000000e+00> : vector<32x128xf32>
    %74 = tpu.matmul %0, %73, %cst_47 {dimension_numbers = #tpu.dot_dimension_numbers<[1], [0], [0], [1], [0, 0, 1, 1], [], []>} : vector<32x8xf32>, vector<8x128xf32>, vector<32x128xf32> -> vector<32x128xf32>
    %75 = vector.broadcast %1 : vector<32x1xf32> to vector<32x128xf32>
    %76 = arith.addf %74, %75 : vector<32x128xf32>
    %cst_48 = arith.constant 0.000000e+00 : f32
    %77 = vector.broadcast %cst_48 : f32 to vector<32x128xf32>
    %78 = arith.maximumf %76, %77 : vector<32x128xf32>
    %cst_49 = arith.constant dense<0.000000e+00> : vector<32x128xf32>
    %79 = tpu.matmul %2, %78, %cst_49 {dimension_numbers = #tpu.dot_dimension_numbers<[1], [0], [0], [1], [0, 0, 1, 1], [], []>} : vector<32x32xf32>, vector<32x128xf32>, vector<32x128xf32> -> vector<32x128xf32>
    %80 = vector.broadcast %3 : vector<32x1xf32> to vector<32x128xf32>
    %81 = arith.addf %79, %80 : vector<32x128xf32>
    %cst_50 = arith.constant 0.000000e+00 : f32
    %82 = vector.broadcast %cst_50 : f32 to vector<32x128xf32>
    %83 = arith.maximumf %81, %82 : vector<32x128xf32>
    %84 = arith.maximumf %71, %83 : vector<32x128xf32>
    %c6 = arith.constant 6 : index
    %c0_51 = arith.constant 0 : index
    %c0_52 = arith.constant 0 : index
    %85 = vector.load %arg1[%c6, %c0_51, %c0_52] : memref<8x8x128xf32, #tpu.memory_space<vmem>>, vector<1x8x128xf32>
    %86 = vector.shape_cast %85 : vector<1x8x128xf32> to vector<8x128xf32>
    %cst_53 = arith.constant dense<0.000000e+00> : vector<32x128xf32>
    %87 = tpu.matmul %0, %86, %cst_53 {dimension_numbers = #tpu.dot_dimension_numbers<[1], [0], [0], [1], [0, 0, 1, 1], [], []>} : vector<32x8xf32>, vector<8x128xf32>, vector<32x128xf32> -> vector<32x128xf32>
    %88 = vector.broadcast %1 : vector<32x1xf32> to vector<32x128xf32>
    %89 = arith.addf %87, %88 : vector<32x128xf32>
    %cst_54 = arith.constant 0.000000e+00 : f32
    %90 = vector.broadcast %cst_54 : f32 to vector<32x128xf32>
    %91 = arith.maximumf %89, %90 : vector<32x128xf32>
    %cst_55 = arith.constant dense<0.000000e+00> : vector<32x128xf32>
    %92 = tpu.matmul %2, %91, %cst_55 {dimension_numbers = #tpu.dot_dimension_numbers<[1], [0], [0], [1], [0, 0, 1, 1], [], []>} : vector<32x32xf32>, vector<32x128xf32>, vector<32x128xf32> -> vector<32x128xf32>
    %93 = vector.broadcast %3 : vector<32x1xf32> to vector<32x128xf32>
    %94 = arith.addf %92, %93 : vector<32x128xf32>
    %cst_56 = arith.constant 0.000000e+00 : f32
    %95 = vector.broadcast %cst_56 : f32 to vector<32x128xf32>
    %96 = arith.maximumf %94, %95 : vector<32x128xf32>
    %97 = arith.maximumf %84, %96 : vector<32x128xf32>
    %c7 = arith.constant 7 : index
    %c0_57 = arith.constant 0 : index
    %c0_58 = arith.constant 0 : index
    %98 = vector.load %arg1[%c7, %c0_57, %c0_58] : memref<8x8x128xf32, #tpu.memory_space<vmem>>, vector<1x8x128xf32>
    %99 = vector.shape_cast %98 : vector<1x8x128xf32> to vector<8x128xf32>
    %cst_59 = arith.constant dense<0.000000e+00> : vector<32x128xf32>
    %100 = tpu.matmul %0, %99, %cst_59 {dimension_numbers = #tpu.dot_dimension_numbers<[1], [0], [0], [1], [0, 0, 1, 1], [], []>} : vector<32x8xf32>, vector<8x128xf32>, vector<32x128xf32> -> vector<32x128xf32>
    %101 = vector.broadcast %1 : vector<32x1xf32> to vector<32x128xf32>
    %102 = arith.addf %100, %101 : vector<32x128xf32>
    %cst_60 = arith.constant 0.000000e+00 : f32
    %103 = vector.broadcast %cst_60 : f32 to vector<32x128xf32>
    %104 = arith.maximumf %102, %103 : vector<32x128xf32>
    %cst_61 = arith.constant dense<0.000000e+00> : vector<32x128xf32>
    %105 = tpu.matmul %2, %104, %cst_61 {dimension_numbers = #tpu.dot_dimension_numbers<[1], [0], [0], [1], [0, 0, 1, 1], [], []>} : vector<32x32xf32>, vector<32x128xf32>, vector<32x128xf32> -> vector<32x128xf32>
    %106 = vector.broadcast %3 : vector<32x1xf32> to vector<32x128xf32>
    %107 = arith.addf %105, %106 : vector<32x128xf32>
    %cst_62 = arith.constant 0.000000e+00 : f32
    %108 = vector.broadcast %cst_62 : f32 to vector<32x128xf32>
    %109 = arith.maximumf %107, %108 : vector<32x128xf32>
    %110 = arith.maximumf %97, %109 : vector<32x128xf32>
    %cst_63 = arith.constant dense<0.000000e+00> : vector<32x128xf32>
    %111 = tpu.matmul %4, %110, %cst_63 {dimension_numbers = #tpu.dot_dimension_numbers<[1], [0], [0], [1], [0, 0, 1, 1], [], []>} : vector<32x32xf32>, vector<32x128xf32>, vector<32x128xf32> -> vector<32x128xf32>
    %112 = vector.broadcast %5 : vector<32x1xf32> to vector<32x128xf32>
    %113 = arith.addf %111, %112 : vector<32x128xf32>
    %cst_64 = arith.constant 0.000000e+00 : f32
    %114 = vector.broadcast %cst_64 : f32 to vector<32x128xf32>
    %115 = arith.maximumf %113, %114 : vector<32x128xf32>
    %cst_65 = arith.constant dense<0.000000e+00> : vector<32x128xf32>
    %116 = tpu.matmul %6, %115, %cst_65 {dimension_numbers = #tpu.dot_dimension_numbers<[1], [0], [0], [1], [0, 0, 1, 1], [], []>} : vector<32x32xf32>, vector<32x128xf32>, vector<32x128xf32> -> vector<32x128xf32>
    %117 = vector.broadcast %7 : vector<32x1xf32> to vector<32x128xf32>
    %118 = arith.addf %116, %117 : vector<32x128xf32>
    %cst_66 = arith.constant 0.000000e+00 : f32
    %119 = vector.broadcast %cst_66 : f32 to vector<32x128xf32>
    %120 = arith.maximumf %118, %119 : vector<32x128xf32>
    %c0_67 = arith.constant 0 : index
    %c0_68 = arith.constant 0 : index
    %121 = vector.load %arg10[%c0_67, %c0_68] : memref<32x128xf32, #tpu.memory_space<vmem>>, vector<32x128xf32>
    tpu.vector_store %arg10[%c0_67, %c0_68], %120 {strides = array<i32>} : memref<32x128xf32, #tpu.memory_space<vmem>>, vector<32x128xf32>,
    return
  }
  func.func @transform_0(%arg0: i32) -> (i32, i32, i32) {
    %c0_i32 = arith.constant 0 : i32
    %c0_i32_0 = arith.constant 0 : i32
    %c0_i32_1 = arith.constant 0 : i32
    return %c0_i32, %c0_i32_0, %arg0 : i32, i32, i32
  }
  func.func @transform_1(%arg0: i32) -> (i32, i32) {
    %c0_i32 = arith.constant 0 : i32
    %c0_i32_0 = arith.constant 0 : i32
    %c0_i32_1 = arith.constant 0 : i32
    return %c0_i32, %c0_i32_0 : i32, i32
  }
  func.func @transform_2(%arg0: i32) -> (i32, i32) {
    %c0_i32 = arith.constant 0 : i32
    %c0_i32_0 = arith.constant 0 : i32
    %c0_i32_1 = arith.constant 0 : i32
    return %c0_i32, %c0_i32_0 : i32, i32
  }
  func.func @transform_3(%arg0: i32) -> (i32, i32) {
    %c0_i32 = arith.constant 0 : i32
    %c0_i32_0 = arith.constant 0 : i32
    %c0_i32_1 = arith.constant 0 : i32
    return %c0_i32, %c0_i32_0 : i32, i32
  }
  func.func @transform_4(%arg0: i32) -> (i32, i32) {
    %c0_i32 = arith.constant 0 : i32
    %c0_i32_0 = arith.constant 0 : i32
    %c0_i32_1 = arith.constant 0 : i32
    return %c0_i32, %c0_i32_0 : i32, i32
  }
  func.func @transform_5(%arg0: i32) -> (i32, i32) {
    %c0_i32 = arith.constant 0 : i32
    %c0_i32_0 = arith.constant 0 : i32
    %c0_i32_1 = arith.constant 0 : i32
    return %c0_i32, %c0_i32_0 : i32, i32
  }
  func.func @transform_6(%arg0: i32) -> (i32, i32) {
    %c0_i32 = arith.constant 0 : i32
    %c0_i32_0 = arith.constant 0 : i32
    %c0_i32_1 = arith.constant 0 : i32
    return %c0_i32, %c0_i32_0 : i32, i32
  }
  func.func @transform_7(%arg0: i32) -> (i32, i32) {
    %c0_i32 = arith.constant 0 : i32
    %c0_i32_0 = arith.constant 0 : i32
    %c0_i32_1 = arith.constant 0 : i32
    return %c0_i32, %c0_i32_0 : i32, i32
  }
  func.func @transform_8(%arg0: i32) -> (i32, i32) {
    %c0_i32 = arith.constant 0 : i32
    %c0_i32_0 = arith.constant 0 : i32
    %c0_i32_1 = arith.constant 0 : i32
    return %c0_i32, %c0_i32_0 : i32, i32
  }
  func.func @transform_9(%arg0: i32) -> (i32, i32) {
    %c0_i32 = arith.constant 0 : i32
    %c0_i32_0 = arith.constant 0 : i32
    return %c0_i32, %arg0 : i32, i32
  }
}

</mosaic_0001>

<llo_original>
// kernel: tpu_custom_call.1
$region0: #{tpu_custom_call.1}
  #allocation0 [shape = 'u32[]', space=smem, size = 0x4, offset = 0x4, fixed_abs, tag = 'smem constant byte address 0x4 - core index']
  #allocation1 [shape = 'u32[144,128]{1,0:T(1,128)}', space=vmem, size = 0x12000, scoped, tag = 'internal scratch']
  %s0 = inlined_call_operand.vmem [shape: f32[8,8,128], index: 0, kind: input, shape index: {}]
  %s1 = inlined_call_operand.vmem [shape: f32[32,8], index: 1, kind: input, shape index: {}]
  %s2 = inlined_call_operand.vmem [shape: f32[32,1], index: 2, kind: input, shape index: {}]
  %s3 = inlined_call_operand.vmem [shape: f32[32,32], index: 3, kind: input, shape index: {}]
  %s4 = inlined_call_operand.vmem [shape: f32[32,1], index: 4, kind: input, shape index: {}]
  %s5 = inlined_call_operand.vmem [shape: f32[32,32], index: 5, kind: input, shape index: {}]
  %s6 = inlined_call_operand.vmem [shape: f32[32,1], index: 6, kind: input, shape index: {}]
  %s7 = inlined_call_operand.vmem [shape: f32[32,32], index: 7, kind: input, shape index: {}]
  %s8 = inlined_call_operand.vmem [shape: f32[32,1], index: 8, kind: input, shape index: {}]
  %s9 = inlined_call_operand.hbm [shape: f32[32,128], index: 9, kind: output, shape index: {}]
  %s10 = sld [smem:[#allocation0]]
  $region46: #{tpu_custom_call.1} parent=0
    _
  %s12 = ssub.s32 1, %s10
  %s13 = scalar_select 0, %s12, %s10
  $region1: #{tpu_custom_call.1} parent=0
    #allocation2 [shape = 'u8[16384]{0}', space=vmem, size = 0x4000, scoped, tag = 'output window, operand 0, single buffered']
    #allocation3 [shape = 's32[1]{0}', space=sflag, size = 0x4, scoped, tag = 'scoped memory for tpu_custom_call.1']
    %14 = vsyncpa [#allocation3], 0
    // Predicated region
    $region2: #{tpu_custom_call.1} parent=1 // pred_check
      _
    $region3: #{tpu_custom_call.1} parent=1 // pred_check_branch
      %16 = sbr.rel (0) target = $region5
    $region4: #{tpu_custom_call.1} parent=1 // pred_region
      _
    $region5: #{tpu_custom_call.1} parent=1 // pred_fallthru
      _
    // Predicated region
    $region6: #{tpu_custom_call.1} parent=1 // pred_check
      _
    $region7: #{tpu_custom_call.1} parent=1 // pred_check_branch
      %18 = sbr.rel (0) target = $region9
    $region8: #{tpu_custom_call.1} parent=1 // pred_region
      _
    $region9: #{tpu_custom_call.1} parent=1 // pred_fallthru
      _
    // Predicated region
    $region10: #{tpu_custom_call.1} parent=1 // pred_check
      _
    $region11: #{tpu_custom_call.1} parent=1 // pred_check_branch
      %20 = sbr.rel (0) target = $region13
    $region12: #{tpu_custom_call.1} parent=1 // pred_region
      _
    $region13: #{tpu_custom_call.1} parent=1 // pred_fallthru
      _
    // Predicated region
    $region14: #{tpu_custom_call.1} parent=1 // pred_check
      _
    $region15: #{tpu_custom_call.1} parent=1 // pred_check_branch
      %22 = sbr.rel (0) target = $region17
    $region16: #{tpu_custom_call.1} parent=1 // pred_region
      _
    $region17: #{tpu_custom_call.1} parent=1 // pred_fallthru
      _
    // Predicated region
    $region18: #{tpu_custom_call.1} parent=1 // pred_check
      _
    $region19: #{tpu_custom_call.1} parent=1 // pred_check_branch
      %24 = sbr.rel (0) target = $region21
    $region20: #{tpu_custom_call.1} parent=1 // pred_region
      _
    $region21: #{tpu_custom_call.1} parent=1 // pred_fallthru
      _
    // Predicated region
    $region22: #{tpu_custom_call.1} parent=1 // pred_check
      _
    $region23: #{tpu_custom_call.1} parent=1 // pred_check_branch
      %26 = sbr.rel (0) target = $region25
    $region24: #{tpu_custom_call.1} parent=1 // pred_region
      _
    $region25: #{tpu_custom_call.1} parent=1 // pred_fallthru
      _
    // Predicated region
    $region26: #{tpu_custom_call.1} parent=1 // pred_check
      _
    $region27: #{tpu_custom_call.1} parent=1 // pred_check_branch
      %28 = sbr.rel (0) target = $region29
    $region28: #{tpu_custom_call.1} parent=1 // pred_region
      _
    $region29: #{tpu_custom_call.1} parent=1 // pred_fallthru
      _
    // Predicated region
    $region30: #{tpu_custom_call.1} parent=1 // pred_check
      _
    $region31: #{tpu_custom_call.1} parent=1 // pred_check_branch
      %30 = sbr.rel (0) target = $region33
    $region32: #{tpu_custom_call.1} parent=1 // pred_region
      _
    $region33: #{tpu_custom_call.1} parent=1 // pred_fallthru
      _
    // Predicated region
    $region34: #{tpu_custom_call.1} parent=1 // pred_check
      _
    $region35: #{tpu_custom_call.1} parent=1 // pred_check_branch
      %32 = sbr.rel (0) target = $region37
    $region36: #{tpu_custom_call.1} parent=1 // pred_region
      _
    $region37: #{tpu_custom_call.1} parent=1 // pred_fallthru
      _
    %v33 = vld [vmem:[%s1] sm:$0xff]
    %v34 = vld [vmem:[%s1 + $0x8] sm:$0xff]
    %v35 = vld [vmem:[%s1 + $0x10] sm:$0xff]
    %v36 = vld [vmem:[%s1 + $0x18] sm:$0xff]
    %v37 = vld [vmem:[%s2] sm:$0xff]
    %v38 = vld [vmem:[%s2 + $0x8] sm:$0xff]
    %v39 = vld [vmem:[%s2 + $0x10] sm:$0xff]
    %v40 = vld [vmem:[%s2 + $0x18] sm:$0xff]
    %v41 = vld [vmem:[%s3] sm:$0xff]
    %v42 = vld [vmem:[%s3 + $0x8] sm:$0xff]
    %v43 = vld [vmem:[%s3 + $0x10] sm:$0xff]
    %v44 = vld [vmem:[%s3 + $0x18] sm:$0xff]
    %v45 = vld [vmem:[%s4] sm:$0xff]
    %v46 = vld [vmem:[%s4 + $0x8] sm:$0xff]
    %v47 = vld [vmem:[%s4 + $0x10] sm:$0xff]
    %v48 = vld [vmem:[%s4 + $0x18] sm:$0xff]
    %v49 = vld [vmem:[%s5] sm:$0xff]
    %v50 = vld [vmem:[%s5 + $0x8] sm:$0xff]
    %v51 = vld [vmem:[%s5 + $0x10] sm:$0xff]
    %v52 = vld [vmem:[%s5 + $0x18] sm:$0xff]
    %v53 = vld [vmem:[%s6] sm:$0xff]
    %v54 = vld [vmem:[%s6 + $0x8] sm:$0xff]
    %v55 = vld [vmem:[%s6 + $0x10] sm:$0xff]
    %v56 = vld [vmem:[%s6 + $0x18] sm:$0xff]
    %v57 = vld [vmem:[%s7] sm:$0xff]
    %v58 = vld [vmem:[%s7 + $0x8] sm:$0xff]
    %v59 = vld [vmem:[%s7 + $0x10] sm:$0xff]
    %v60 = vld [vmem:[%s7 + $0x18] sm:$0xff]
    %v61 = vld [vmem:[%s8] sm:$0xff]
    %v62 = vld [vmem:[%s8 + $0x8] sm:$0xff]
    %v63 = vld [vmem:[%s8 + $0x10] sm:$0xff]
    %v64 = vld [vmem:[%s8 + $0x18] sm:$0xff]
    %v65 = vld [vmem:[%s0] sm:$0xff]
    %67 = vset.pattern.permute.xlu0 0
    %68 = vperm.xlu0 %67, %v37
    %v69 = vpop.permute.xlu0 %68
    %72 = vset.pattern.permute.xlu0 0
    %73 = vperm.xlu0 %72, %v38
    %v74 = vpop.permute.xlu0 %73
    %77 = vset.pattern.permute.xlu0 0
    %78 = vperm.xlu0 %77, %v39
    %v79 = vpop.permute.xlu0 %78
    %82 = vset.pattern.permute.xlu0 0
    %83 = vperm.xlu0 %82, %v40
    %v84 = vpop.permute.xlu0 %83
    %vm86 = vcmask 64512
    %v88 = vsel %vm86, %v33, 0
    %v91 = vsel %vm86, %v34, 0
    %v94 = vsel %vm86, %v35, 0
    %v97 = vsel %vm86, %v36, 0
    %99 = vmatprep.subr.mxu0 0.0
    %100 = vmatpush1.msra.mxu0 %v65
    %101 = vmatprep.subr.mxu0 0.0
    %102 = vmatpush1.msra.mxu0 0.0
    %103 = vmatprep.subr.mxu0 0.0
    %104 = vmatpush1.msra.mxu0 0.0
    %105 = vmatprep.subr.mxu0 0.0
    %106 = vmatpush1.msra.mxu0 0.0
    %107 = vmatprep.subr.mxu0 0.0
    %108 = vmatpush1.msra.mxu0 0.0
    %109 = vmatprep.subr.mxu0 0.0
    %110 = vmatpush1.msra.mxu0 0.0
    %111 = vmatprep.subr.mxu0 0.0
    %112 = vmatpush1.msra.mxu0 0.0
    %113 = vmatprep.subr.mxu0 0.0
    %114 = vmatpush1.msra.mxu0 0.0
    %115 = vmatprep.subr.mxu0 0.0
    %116 = vmatpush1.msra.mxu0 0.0
    %117 = vmatprep.subr.mxu0 0.0
    %118 = vmatpush1.msra.mxu0 0.0
    %119 = vmatprep.subr.mxu0 0.0
    %120 = vmatpush1.msra.mxu0 0.0
    %121 = vmatprep.subr.mxu0 0.0
    %122 = vmatpush1.msra.mxu0 0.0
    %123 = vmatprep.subr.mxu0 0.0
    %124 = vmatpush1.msra.mxu0 0.0
    %125 = vmatprep.subr.mxu0 0.0
    %126 = vmatpush1.msra.mxu0 0.0
    %127 = vmatprep.subr.mxu0 0.0
    %128 = vmatpush1.msra.mxu0 0.0
    %129 = vmatprep.subr.mxu0 0.0
    %130 = vmatpush1.msra.mxu0 0.0
    %131 = vmatprep.subr.mxu0 0.0
    %132 = vmatpush1.msra.mxu0 0.0
    %133 = vmatprep.subr.mxu0 0.0
    %134 = vmatpush1.msra.mxu0 0.0
    %135 = vmatprep.subr.mxu0 0.0
    %136 = vmatpush1.msra.mxu0 0.0
    %137 = vmatprep.subr.mxu0 0.0
    %138 = vmatpush1.msra.mxu0 0.0
    %139 = vmatprep.subr.mxu0 0.0
    %140 = vmatpush1.msra.mxu0 0.0
    %141 = vmatprep.subr.mxu0 0.0
    %142 = vmatpush1.msra.mxu0 0.0
    %143 = vmatprep.subr.mxu0 0.0
    %144 = vmatpush1.msra.mxu0 0.0
    %145 = vmatprep.subr.mxu0 0.0
    %146 = vmatpush1.msra.mxu0 0.0
    %147 = vmatprep.subr.mxu0 0.0
    %148 = vmatpush1.msra.mxu0 0.0
    %149 = vmatprep.subr.mxu0 0.0
    %150 = vmatpush1.msra.mxu0 0.0
    %151 = vmatprep.subr.mxu0 0.0
    %152 = vmatpush1.msra.mxu0 0.0
    %153 = vmatprep.subr.mxu0 0.0
    %154 = vmatpush1.msra.mxu0 0.0
    %155 = vmatprep.subr.mxu0 0.0
    %156 = vmatpush1.msra.mxu0 0.0
    %157 = vmatprep.subr.mxu0 0.0
    %158 = vmatpush1.msra.mxu0 0.0
    %159 = vmatprep.subr.mxu0 0.0
    %160 = vmatpush1.msra.mxu0 0.0
    %161 = vmatprep.subr.mxu0 0.0
    %162 = vmatpush1.msra.mxu0 0.0
    %163 = vmatprep.mubr.f32.mxu0 0.0
    %164 = vmatmul.mubr.f32.gmra.mrb[0].mxu0 %v88
    %v165 = vpop.f32.mrb[0].mxu0
    %v166 = vadd.f32 %v69, %v165
    %v167 = vpop.f32.mrb[0].mxu0
    %168 = vmatprep.mubr.f32.mxu0 0.0
    %169 = vmatmul.mubr.f32.gmra.mrb[0].mxu0 %v91
    %v170 = vpop.f32.mrb[0].mxu0
    %v171 = vadd.f32 %v74, %v170
    %v172 = vpop.f32.mrb[0].mxu0
    %173 = vmatprep.mubr.f32.mxu0 0.0
    %174 = vmatmul.mubr.f32.gmra.mrb[0].mxu0 %v94
    %v175 = vpop.f32.mrb[0].mxu0
    %v176 = vadd.f32 %v79, %v175
    %v177 = vpop.f32.mrb[0].mxu0
    %178 = vmatprep.mubr.f32.mxu0 0.0
    %179 = vmatmul.mubr.f32.gmra.mrb[0].mxu0 %v97
    %v180 = vpop.f32.mrb[0].mxu0
    %v181 = vadd.f32 %v84, %v180
    %v182 = vpop.f32.mrb[0].mxu0
    %183 = vdwg.mxu0
    %v184 = vmax.f32 %v166, 0.0
    %v185 = vmax.f32 %v171, 0.0
    %v186 = vmax.f32 %v176, 0.0
    %v187 = vmax.f32 %v181, 0.0
    %189 = vset.pattern.permute.xlu0 0
    %190 = vperm.xlu0 %189, %v45
    %v191 = vpop.permute.xlu0 %190
    %194 = vset.pattern.permute.xlu0 0
    %195 = vperm.xlu0 %194, %v46
    %v196 = vpop.permute.xlu0 %195
    %199 = vset.pattern.permute.xlu0 0
    %200 = vperm.xlu0 %199, %v47
    %v201 = vpop.permute.xlu0 %200
    %204 = vset.pattern.permute.xlu0 0
    %205 = vperm.xlu0 %204, %v48
    %v206 = vpop.permute.xlu0 %205
    %vm208 = vcmask 261120
    %v210 = vsel %vm208, %v41, 0
    %v213 = vsel %vm208, %v42, 0
    %v216 = vsel %vm208, %v43, 0
    %v219 = vsel %vm208, %v44, 0
    %221 = vmatprep.subr.mxu0 0.0
    %222 = vmatpush1.msra.mxu0 %v184
    %223 = vmatprep.subr.mxu0 0.0
    %224 = vmatpush1.msra.mxu0 %v185
    %225 = vmatprep.subr.mxu0 0.0
    %226 = vmatpush1.msra.mxu0 %v186
    %227 = vmatprep.subr.mxu0 0.0
    %228 = vmatpush1.msra.mxu0 %v187
    %229 = vmatprep.subr.mxu0 0.0
    %230 = vmatpush1.msra.mxu0 0.0
    %231 = vmatprep.subr.mxu0 0.0
    %232 = vmatpush1.msra.mxu0 0.0
    %233 = vmatprep.subr.mxu0 0.0
    %234 = vmatpush1.msra.mxu0 0.0
    %235 = vmatprep.subr.mxu0 0.0
    %236 = vmatpush1.msra.mxu0 0.0
    %237 = vmatprep.subr.mxu0 0.0
    %238 = vmatpush1.msra.mxu0 0.0
    %239 = vmatprep.subr.mxu0 0.0
    %240 = vmatpush1.msra.mxu0 0.0
    %241 = vmatprep.subr.mxu0 0.0
    %242 = vmatpush1.msra.mxu0 0.0
    %243 = vmatprep.subr.mxu0 0.0
    %244 = vmatpush1.msra.mxu0 0.0
    %245 = vmatprep.subr.mxu0 0.0
    %246 = vmatpush1.msra.mxu0 0.0
    %247 = vmatprep.subr.mxu0 0.0
    %248 = vmatpush1.msra.mxu0 0.0
    %249 = vmatprep.subr.mxu0 0.0
    %250 = vmatpush1.msra.mxu0 0.0
    %251 = vmatprep.subr.mxu0 0.0
    %252 = vmatpush1.msra.mxu0 0.0
    %253 = vmatprep.subr.mxu0 0.0
    %254 = vmatpush1.msra.mxu0 0.0
    %255 = vmatprep.subr.mxu0 0.0
    %256 = vmatpush1.msra.mxu0 0.0
    %257 = vmatprep.subr.mxu0 0.0
    %258 = vmatpush1.msra.mxu0 0.0
    %259 = vmatprep.subr.mxu0 0.0
    %260 = vmatpush1.msra.mxu0 0.0
    %261 = vmatprep.subr.mxu0 0.0
    %262 = vmatpush1.msra.mxu0 0.0
    %263 = vmatprep.subr.mxu0 0.0
    %264 = vmatpush1.msra.mxu0 0.0
    %265 = vmatprep.subr.mxu0 0.0
    %266 = vmatpush1.msra.mxu0 0.0
    %267 = vmatprep.subr.mxu0 0.0
    %268 = vmatpush1.msra.mxu0 0.0
    %269 = vmatprep.subr.mxu0 0.0
    %270 = vmatpush1.msra.mxu0 0.0
    %271 = vmatprep.subr.mxu0 0.0
    %272 = vmatpush1.msra.mxu0 0.0
    %273 = vmatprep.subr.mxu0 0.0
    %274 = vmatpush1.msra.mxu0 0.0
    %275 = vmatprep.subr.mxu0 0.0
    %276 = vmatpush1.msra.mxu0 0.0
    %277 = vmatprep.subr.mxu0 0.0
    %278 = vmatpush1.msra.mxu0 0.0
    %279 = vmatprep.subr.mxu0 0.0
    %280 = vmatpush1.msra.mxu0 0.0
    %281 = vmatprep.subr.mxu0 0.0
    %282 = vmatpush1.msra.mxu0 0.0
    %283 = vmatprep.subr.mxu0 0.0
    %284 = vmatpush1.msra.mxu0 0.0
    %285 = vmatprep.mubr.f32.mxu0 0.0
    %286 = vmatmul.mubr.f32.gmra.mrb[0].mxu0 %v210
    %v287 = vpop.f32.mrb[0].mxu0
    %v288 = vadd.f32 %v191, %v287
    %v289 = vpop.f32.mrb[0].mxu0
    %290 = vmatprep.mubr.f32.mxu0 0.0
    %291 = vmatmul.mubr.f32.gmra.mrb[0].mxu0 %v213
    %v292 = vpop.f32.mrb[0].mxu0
    %v293 = vadd.f32 %v196, %v292
    %v294 = vpop.f32.mrb[0].mxu0
    %295 = vmatprep.mubr.f32.mxu0 0.0
    %296 = vmatmul.mubr.f32.gmra.mrb[0].mxu0 %v216
    %v297 = vpop.f32.mrb[0].mxu0
    %v298 = vadd.f32 %v201, %v297
    %v299 = vpop.f32.mrb[0].mxu0
    %300 = vmatprep.mubr.f32.mxu0 0.0
    %301 = vmatmul.mubr.f32.gmra.mrb[0].mxu0 %v219
    %v302 = vpop.f32.mrb[0].mxu0
    %v303 = vadd.f32 %v206, %v302
    %v304 = vpop.f32.mrb[0].mxu0
    %305 = vdwg.mxu0
    %v306 = vmax.f32 %v288, 0.0
    %v307 = vmax.f32 %v293, 0.0
    %v308 = vmax.f32 %v298, 0.0
    %v309 = vmax.f32 %v303, 0.0
    %s310 = scalar_lea.vmem %s0, 8
    %v311 = vld [vmem:[%s310] sm:$0xff]
    %312 = vmatprep.subr.mxu0 0.0
    %313 = vmatpush1.msra.mxu0 %v311
    %314 = vmatprep.subr.mxu0 0.0
    %315 = vmatpush1.msra.mxu0 0.0
    %316 = vmatprep.subr.mxu0 0.0
    %317 = vmatpush1.msra.mxu0 0.0
    %318 = vmatprep.subr.mxu0 0.0
    %319 = vmatpush1.msra.mxu0 0.0
    %320 = vmatprep.subr.mxu0 0.0
    %321 = vmatpush1.msra.mxu0 0.0
    %322 = vmatprep.subr.mxu0 0.0
    %323 = vmatpush1.msra.mxu0 0.0
    %324 = vmatprep.subr.mxu0 0.0
    %325 = vmatpush1.msra.mxu0 0.0
    %326 = vmatprep.subr.mxu0 0.0
    %327 = vmatpush1.msra.mxu0 0.0
    %328 = vmatprep.subr.mxu0 0.0
    %329 = vmatpush1.msra.mxu0 0.0
    %330 = vmatprep.subr.mxu0 0.0
    %331 = vmatpush1.msra.mxu0 0.0
    %332 = vmatprep.subr.mxu0 0.0
    %333 = vmatpush1.msra.mxu0 0.0
    %334 = vmatprep.subr.mxu0 0.0
    %335 = vmatpush1.msra.mxu0 0.0
    %336 = vmatprep.subr.mxu0 0.0
    %337 = vmatpush1.msra.mxu0 0.0
    %338 = vmatprep.subr.mxu0 0.0
    %339 = vmatpush1.msra.mxu0 0.0
    %340 = vmatprep.subr.mxu0 0.0
    %341 = vmatpush1.msra.mxu0 0.0
    %342 = vmatprep.subr.mxu0 0.0
    %343 = vmatpush1.msra.mxu0 0.0
    %344 = vmatprep.subr.mxu0 0.0
    %345 = vmatpush1.msra.mxu0 0.0
    %346 = vmatprep.subr.mxu0 0.0
    %347 = vmatpush1.msra.mxu0 0.0
    %348 = vmatprep.subr.mxu0 0.0
    %349 = vmatpush1.msra.mxu0 0.0
    %350 = vmatprep.subr.mxu0 0.0
    %351 = vmatpush1.msra.mxu0 0.0
    %352 = vmatprep.subr.mxu0 0.0
    %353 = vmatpush1.msra.mxu0 0.0
    %354 = vmatprep.subr.mxu0 0.0
    %355 = vmatpush1.msra.mxu0 0.0
    %356 = vmatprep.subr.mxu0 0.0
    %357 = vmatpush1.msra.mxu0 0.0
    %358 = vmatprep.subr.mxu0 0.0
    %359 = vmatpush1.msra.mxu0 0.0
    %360 = vmatprep.subr.mxu0 0.0
    %361 = vmatpush1.msra.mxu0 0.0
    %362 = vmatprep.subr.mxu0 0.0
    %363 = vmatpush1.msra.mxu0 0.0
    %364 = vmatprep.subr.mxu0 0.0
    %365 = vmatpush1.msra.mxu0 0.0
    %366 = vmatprep.subr.mxu0 0.0
    %367 = vmatpush1.msra.mxu0 0.0
    %368 = vmatprep.subr.mxu0 0.0
    %369 = vmatpush1.msra.mxu0 0.0
    %370 = vmatprep.subr.mxu0 0.0
    %371 = vmatpush1.msra.mxu0 0.0
    %372 = vmatprep.subr.mxu0 0.0
    %373 = vmatpush1.msra.mxu0 0.0
    %374 = vmatprep.subr.mxu0 0.0
    %375 = vmatpush1.msra.mxu0 0.0
    %376 = vmatprep.mubr.f32.mxu0 0.0
    %377 = vmatmul.mubr.f32.gmra.mrb[0].mxu0 %v88
    %v378 = vpop.f32.mrb[0].mxu0
    %v379 = vadd.f32 %v69, %v378
    %v380 = vpop.f32.mrb[0].mxu0
    %381 = vmatprep.mubr.f32.mxu0 0.0
    %382 = vmatmul.mubr.f32.gmra.mrb[0].mxu0 %v91
    %v383 = vpop.f32.mrb[0].mxu0
    %v384 = vadd.f32 %v74, %v383
    %v385 = vpop.f32.mrb[0].mxu0
    %386 = vmatprep.mubr.f32.mxu0 0.0
    %387 = vmatmul.mubr.f32.gmra.mrb[0].mxu0 %v94
    %v388 = vpop.f32.mrb[0].mxu0
    %v389 = vadd.f32 %v79, %v388
    %v390 = vpop.f32.mrb[0].mxu0
    %391 = vmatprep.mubr.f32.mxu0 0.0
    %392 = vmatmul.mubr.f32.gmra.mrb[0].mxu0 %v97
    %v393 = vpop.f32.mrb[0].mxu0
    %v394 = vadd.f32 %v84, %v393
    %v395 = vpop.f32.mrb[0].mxu0
    %396 = vdwg.mxu0
    %v397 = vmax.f32 %v379, 0.0
    %v398 = vmax.f32 %v384, 0.0
    %v399 = vmax.f32 %v389, 0.0
    %v400 = vmax.f32 %v394, 0.0
    %401 = vmatprep.subr.mxu0 0.0
    %402 = vmatpush1.msra.mxu0 %v397
    %403 = vmatprep.subr.mxu0 0.0
    %404 = vmatpush1.msra.mxu0 %v398
    %405 = vmatprep.subr.mxu0 0.0
    %406 = vmatpush1.msra.mxu0 %v399
    %407 = vmatprep.subr.mxu0 0.0
    %408 = vmatpush1.msra.mxu0 %v400
    %409 = vmatprep.subr.mxu0 0.0
    %410 = vmatpush1.msra.mxu0 0.0
    %411 = vmatprep.subr.mxu0 0.0
    %412 = vmatpush1.msra.mxu0 0.0
    %413 = vmatprep.subr.mxu0 0.0
    %414 = vmatpush1.msra.mxu0 0.0
    %415 = vmatprep.subr.mxu0 0.0
    %416 = vmatpush1.msra.mxu0 0.0
    %417 = vmatprep.subr.mxu0 0.0
    %418 = vmatpush1.msra.mxu0 0.0
    %419 = vmatprep.subr.mxu0 0.0
    %420 = vmatpush1.msra.mxu0 0.0
    %421 = vmatprep.subr.mxu0 0.0
    %422 = vmatpush1.msra.mxu0 0.0
    %423 = vmatprep.subr.mxu0 0.0
    %424 = vmatpush1.msra.mxu0 0.0
    %425 = vmatprep.subr.mxu0 0.0
    %426 = vmatpush1.msra.mxu0 0.0
    %427 = vmatprep.subr.mxu0 0.0
    %428 = vmatpush1.msra.mxu0 0.0
    %429 = vmatprep.subr.mxu0 0.0
    %430 = vmatpush1.msra.mxu0 0.0
    %431 = vmatprep.subr.mxu0 0.0
    %432 = vmatpush1.msra.mxu0 0.0
    %433 = vmatprep.subr.mxu0 0.0
    %434 = vmatpush1.msra.mxu0 0.0
    %435 = vmatprep.subr.mxu0 0.0
    %436 = vmatpush1.msra.mxu0 0.0
    %437 = vmatprep.subr.mxu0 0.0
    %438 = vmatpush1.msra.mxu0 0.0
    %439 = vmatprep.subr.mxu0 0.0
    %440 = vmatpush1.msra.mxu0 0.0
    %441 = vmatprep.subr.mxu0 0.0
    %442 = vmatpush1.msra.mxu0 0.0
    %443 = vmatprep.subr.mxu0 0.0
    %444 = vmatpush1.msra.mxu0 0.0
    %445 = vmatprep.subr.mxu0 0.0
    %446 = vmatpush1.msra.mxu0 0.0
    %447 = vmatprep.subr.mxu0 0.0
    %448 = vmatpush1.msra.mxu0 0.0
    %449 = vmatprep.subr.mxu0 0.0
    %450 = vmatpush1.msra.mxu0 0.0
    %451 = vmatprep.subr.mxu0 0.0
    %452 = vmatpush1.msra.mxu0 0.0
    %453 = vmatprep.subr.mxu0 0.0
    %454 = vmatpush1.msra.mxu0 0.0
    %455 = vmatprep.subr.mxu0 0.0
    %456 = vmatpush1.msra.mxu0 0.0
    %457 = vmatprep.subr.mxu0 0.0
    %458 = vmatpush1.msra.mxu0 0.0
    %459 = vmatprep.subr.mxu0 0.0
    %460 = vmatpush1.msra.mxu0 0.0
    %461 = vmatprep.subr.mxu0 0.0
    %462 = vmatpush1.msra.mxu0 0.0
    %463 = vmatprep.subr.mxu0 0.0
    %464 = vmatpush1.msra.mxu0 0.0
    %465 = vmatprep.mubr.f32.mxu0 0.0
    %466 = vmatmul.mubr.f32.gmra.mrb[0].mxu0 %v210
    %v467 = vpop.f32.mrb[0].mxu0
    %v468 = vadd.f32 %v191, %v467
    %v469 = vpop.f32.mrb[0].mxu0
    %470 = vmatprep.mubr.f32.mxu0 0.0
    %471 = vmatmul.mubr.f32.gmra.mrb[0].mxu0 %v213
    %v472 = vpop.f32.mrb[0].mxu0
    %v473 = vadd.f32 %v196, %v472
    %v474 = vpop.f32.mrb[0].mxu0
    %475 = vmatprep.mubr.f32.mxu0 0.0
    %476 = vmatmul.mubr.f32.gmra.mrb[0].mxu0 %v216
    %v477 = vpop.f32.mrb[0].mxu0
    %v478 = vadd.f32 %v201, %v477
    %v479 = vpop.f32.mrb[0].mxu0
    %480 = vmatprep.mubr.f32.mxu0 0.0
    %481 = vmatmul.mubr.f32.gmra.mrb[0].mxu0 %v219
    %v482 = vpop.f32.mrb[0].mxu0
    %v483 = vadd.f32 %v206, %v482
    %v484 = vpop.f32.mrb[0].mxu0
    %485 = vdwg.mxu0
    %v486 = vmax.f32 %v468, 0.0
    %v487 = vmax.f32 %v473, 0.0
    %v488 = vmax.f32 %v478, 0.0
    %v489 = vmax.f32 %v483, 0.0
    %v490 = vmax.f32 %v306, %v486
    %v491 = vmax.f32 %v307, %v487
    %v492 = vmax.f32 %v308, %v488
    %v493 = vmax.f32 %v309, %v489
    %s494 = scalar_lea.vmem %s0, 16
    %v495 = vld [vmem:[%s494] sm:$0xff]
    %496 = vmatprep.subr.mxu0 0.0
    %497 = vmatpush1.msra.mxu0 %v495
    %498 = vmatprep.subr.mxu0 0.0
    %499 = vmatpush1.msra.mxu0 0.0
    %500 = vmatprep.subr.mxu0 0.0
    %501 = vmatpush1.msra.mxu0 0.0
    %502 = vmatprep.subr.mxu0 0.0
    %503 = vmatpush1.msra.mxu0 0.0
    %504 = vmatprep.subr.mxu0 0.0
    %505 = vmatpush1.msra.mxu0 0.0
    %506 = vmatprep.subr.mxu0 0.0
    %507 = vmatpush1.msra.mxu0 0.0
    %508 = vmatprep.subr.mxu0 0.0
    %509 = vmatpush1.msra.mxu0 0.0
    %510 = vmatprep.subr.mxu0 0.0
    %511 = vmatpush1.msra.mxu0 0.0
    %512 = vmatprep.subr.mxu0 0.0
    %513 = vmatpush1.msra.mxu0 0.0
    %514 = vmatprep.subr.mxu0 0.0
    %515 = vmatpush1.msra.mxu0 0.0
    %516 = vmatprep.subr.mxu0 0.0
    %517 = vmatpush1.msra.mxu0 0.0
    %518 = vmatprep.subr.mxu0 0.0
    %519 = vmatpush1.msra.mxu0 0.0
    %520 = vmatprep.subr.mxu0 0.0
    %521 = vmatpush1.msra.mxu0 0.0
    %522 = vmatprep.subr.mxu0 0.0
    %523 = vmatpush1.msra.mxu0 0.0
    %524 = vmatprep.subr.mxu0 0.0
    %525 = vmatpush1.msra.mxu0 0.0
    %526 = vmatprep.subr.mxu0 0.0
    %527 = vmatpush1.msra.mxu0 0.0
    %528 = vmatprep.subr.mxu0 0.0
    %529 = vmatpush1.msra.mxu0 0.0
    %530 = vmatprep.subr.mxu0 0.0
    %531 = vmatpush1.msra.mxu0 0.0
    %532 = vmatprep.subr.mxu0 0.0
    %533 = vmatpush1.msra.mxu0 0.0
    %534 = vmatprep.subr.mxu0 0.0
    %535 = vmatpush1.msra.mxu0 0.0
    %536 = vmatprep.subr.mxu0 0.0
    %537 = vmatpush1.msra.mxu0 0.0
    %538 = vmatprep.subr.mxu0 0.0
    %539 = vmatpush1.msra.mxu0 0.0
    %540 = vmatprep.subr.mxu0 0.0
    %541 = vmatpush1.msra.mxu0 0.0
    %542 = vmatprep.subr.mxu0 0.0
    %543 = vmatpush1.msra.mxu0 0.0
    %544 = vmatprep.subr.mxu0 0.0
    %545 = vmatpush1.msra.mxu0 0.0
    %546 = vmatprep.subr.mxu0 0.0
    %547 = vmatpush1.msra.mxu0 0.0
    %548 = vmatprep.subr.mxu0 0.0
    %549 = vmatpush1.msra.mxu0 0.0
    %550 = vmatprep.subr.mxu0 0.0
    %551 = vmatpush1.msra.mxu0 0.0
    %552 = vmatprep.subr.mxu0 0.0
    %553 = vmatpush1.msra.mxu0 0.0
    %554 = vmatprep.subr.mxu0 0.0
    %555 = vmatpush1.msra.mxu0 0.0
    %556 = vmatprep.subr.mxu0 0.0
    %557 = vmatpush1.msra.mxu0 0.0
    %558 = vmatprep.subr.mxu0 0.0
    %559 = vmatpush1.msra.mxu0 0.0
    %560 = vmatprep.mubr.f32.mxu0 0.0
    %561 = vmatmul.mubr.f32.gmra.mrb[0].mxu0 %v88
    %v562 = vpop.f32.mrb[0].mxu0
    %v563 = vadd.f32 %v69, %v562
    %v564 = vpop.f32.mrb[0].mxu0
    %565 = vmatprep.mubr.f32.mxu0 0.0
    %566 = vmatmul.mubr.f32.gmra.mrb[0].mxu0 %v91
    %v567 = vpop.f32.mrb[0].mxu0
    %v568 = vadd.f32 %v74, %v567
    %v569 = vpop.f32.mrb[0].mxu0
    %570 = vmatprep.mubr.f32.mxu0 0.0
    %571 = vmatmul.mubr.f32.gmra.mrb[0].mxu0 %v94
    %v572 = vpop.f32.mrb[0].mxu0
    %v573 = vadd.f32 %v79, %v572
    %v574 = vpop.f32.mrb[0].mxu0
    %575 = vmatprep.mubr.f32.mxu0 0.0
    %576 = vmatmul.mubr.f32.gmra.mrb[0].mxu0 %v97
    %v577 = vpop.f32.mrb[0].mxu0
    %v578 = vadd.f32 %v84, %v577
    %v579 = vpop.f32.mrb[0].mxu0
    %580 = vdwg.mxu0
    %v581 = vmax.f32 %v563, 0.0
    %v582 = vmax.f32 %v568, 0.0
    %v583 = vmax.f32 %v573, 0.0
    %v584 = vmax.f32 %v578, 0.0
    %585 = vmatprep.subr.mxu0 0.0
    %586 = vmatpush1.msra.mxu0 %v581
    %587 = vmatprep.subr.mxu0 0.0
    %588 = vmatpush1.msra.mxu0 %v582
    %589 = vmatprep.subr.mxu0 0.0
    %590 = vmatpush1.msra.mxu0 %v583
    %591 = vmatprep.subr.mxu0 0.0
    %592 = vmatpush1.msra.mxu0 %v584
    %593 = vmatprep.subr.mxu0 0.0
    %594 = vmatpush1.msra.mxu0 0.0
    %595 = vmatprep.subr.mxu0 0.0
    %596 = vmatpush1.msra.mxu0 0.0
    %597 = vmatprep.subr.mxu0 0.0
    %598 = vmatpush1.msra.mxu0 0.0
    %599 = vmatprep.subr.mxu0 0.0
    %600 = vmatpush1.msra.mxu0 0.0
    %601 = vmatprep.subr.mxu0 0.0
    %602 = vmatpush1.msra.mxu0 0.0
    %603 = vmatprep.subr.mxu0 0.0
    %604 = vmatpush1.msra.mxu0 0.0
    %605 = vmatprep.subr.mxu0 0.0
    %606 = vmatpush1.msra.mxu0 0.0
    %607 = vmatprep.subr.mxu0 0.0
    %608 = vmatpush1.msra.mxu0 0.0
    %609 = vmatprep.subr.mxu0 0.0
    %610 = vmatpush1.msra.mxu0 0.0
    %611 = vmatprep.subr.mxu0 0.0
    %612 = vmatpush1.msra.mxu0 0.0
    %613 = vmatprep.subr.mxu0 0.0
    %614 = vmatpush1.msra.mxu0 0.0
    %615 = vmatprep.subr.mxu0 0.0
    %616 = vmatpush1.msra.mxu0 0.0
    %617 = vmatprep.subr.mxu0 0.0
    %618 = vmatpush1.msra.mxu0 0.0
    %619 = vmatprep.subr.mxu0 0.0
    %620 = vmatpush1.msra.mxu0 0.0
    %621 = vmatprep.subr.mxu0 0.0
    %622 = vmatpush1.msra.mxu0 0.0
    %623 = vmatprep.subr.mxu0 0.0
    %624 = vmatpush1.msra.mxu0 0.0
    %625 = vmatprep.subr.mxu0 0.0
    %626 = vmatpush1.msra.mxu0 0.0
    %627 = vmatprep.subr.mxu0 0.0
    %628 = vmatpush1.msra.mxu0 0.0
    %629 = vmatprep.subr.mxu0 0.0
    %630 = vmatpush1.msra.mxu0 0.0
    %631 = vmatprep.subr.mxu0 0.0
    %632 = vmatpush1.msra.mxu0 0.0
    %633 = vmatprep.subr.mxu0 0.0
    %634 = vmatpush1.msra.mxu0 0.0
    %635 = vmatprep.subr.mxu0 0.0
    %636 = vmatpush1.msra.mxu0 0.0
    %637 = vmatprep.subr.mxu0 0.0
    %638 = vmatpush1.msra.mxu0 0.0
    %639 = vmatprep.subr.mxu0 0.0
    %640 = vmatpush1.msra.mxu0 0.0
    %641 = vmatprep.subr.mxu0 0.0
    %642 = vmatpush1.msra.mxu0 0.0
    %643 = vmatprep.subr.mxu0 0.0
    %644 = vmatpush1.msra.mxu0 0.0
    %645 = vmatprep.subr.mxu0 0.0
    %646 = vmatpush1.msra.mxu0 0.0
    %647 = vmatprep.subr.mxu0 0.0
    %648 = vmatpush1.msra.mxu0 0.0
    %649 = vmatprep.mubr.f32.mxu0 0.0
    %650 = vmatmul.mubr.f32.gmra.mrb[0].mxu0 %v210
    %v651 = vpop.f32.mrb[0].mxu0
    %v652 = vadd.f32 %v191, %v651
    %v653 = vpop.f32.mrb[0].mxu0
    %654 = vmatprep.mubr.f32.mxu0 0.0
    %655 = vmatmul.mubr.f32.gmra.mrb[0].mxu0 %v213
    %v656 = vpop.f32.mrb[0].mxu0
    %v657 = vadd.f32 %v196, %v656
    %v658 = vpop.f32.mrb[0].mxu0
    %659 = vmatprep.mubr.f32.mxu0 0.0
    %660 = vmatmul.mubr.f32.gmra.mrb[0].mxu0 %v216
    %v661 = vpop.f32.mrb[0].mxu0
    %v662 = vadd.f32 %v201, %v661
    %v663 = vpop.f32.mrb[0].mxu0
    %664 = vmatprep.mubr.f32.mxu0 0.0
    %665 = vmatmul.mubr.f32.gmra.mrb[0].mxu0 %v219
    %v666 = vpop.f32.mrb[0].mxu0
    %v667 = vadd.f32 %v206, %v666
    %v668 = vpop.f32.mrb[0].mxu0
    %669 = vdwg.mxu0
    %v670 = vmax.f32 %v652, 0.0
    %v671 = vmax.f32 %v657, 0.0
    %v672 = vmax.f32 %v662, 0.0
    %v673 = vmax.f32 %v667, 0.0
    %v674 = vmax.f32 %v490, %v670
    %v675 = vmax.f32 %v491, %v671
    %v676 = vmax.f32 %v492, %v672
    %v677 = vmax.f32 %v493, %v673
    %s678 = scalar_lea.vmem %s0, 24
    %v679 = vld [vmem:[%s678] sm:$0xff]
    %680 = vmatprep.subr.mxu0 0.0
    %681 = vmatpush1.msra.mxu0 %v679
    %682 = vmatprep.subr.mxu0 0.0
    %683 = vmatpush1.msra.mxu0 0.0
    %684 = vmatprep.subr.mxu0 0.0
    %685 = vmatpush1.msra.mxu0 0.0
    %686 = vmatprep.subr.mxu0 0.0
    %687 = vmatpush1.msra.mxu0 0.0
    %688 = vmatprep.subr.mxu0 0.0
    %689 = vmatpush1.msra.mxu0 0.0
    %690 = vmatprep.subr.mxu0 0.0
    %691 = vmatpush1.msra.mxu0 0.0
    %692 = vmatprep.subr.mxu0 0.0
    %693 = vmatpush1.msra.mxu0 0.0
    %694 = vmatprep.subr.mxu0 0.0
    %695 = vmatpush1.msra.mxu0 0.0
    %696 = vmatprep.subr.mxu0 0.0
    %697 = vmatpush1.msra.mxu0 0.0
    %698 = vmatprep.subr.mxu0 0.0
    %699 = vmatpush1.msra.mxu0 0.0
    %700 = vmatprep.subr.mxu0 0.0
    %701 = vmatpush1.msra.mxu0 0.0
    %702 = vmatprep.subr.mxu0 0.0
    %703 = vmatpush1.msra.mxu0 0.0
    %704 = vmatprep.subr.mxu0 0.0
    %705 = vmatpush1.msra.mxu0 0.0
    %706 = vmatprep.subr.mxu0 0.0
    %707 = vmatpush1.msra.mxu0 0.0
    %708 = vmatprep.subr.mxu0 0.0
    %709 = vmatpush1.msra.mxu0 0.0
    %710 = vmatprep.subr.mxu0 0.0
    %711 = vmatpush1.msra.mxu0 0.0
    %712 = vmatprep.subr.mxu0 0.0
    %713 = vmatpush1.msra.mxu0 0.0
    %714 = vmatprep.subr.mxu0 0.0
    %715 = vmatpush1.msra.mxu0 0.0
    %716 = vmatprep.subr.mxu0 0.0
    %717 = vmatpush1.msra.mxu0 0.0
    %718 = vmatprep.subr.mxu0 0.0
    %719 = vmatpush1.msra.mxu0 0.0
    %720 = vmatprep.subr.mxu0 0.0
    %721 = vmatpush1.msra.mxu0 0.0
    %722 = vmatprep.subr.mxu0 0.0
    %723 = vmatpush1.msra.mxu0 0.0
    %724 = vmatprep.subr.mxu0 0.0
    %725 = vmatpush1.msra.mxu0 0.0
    %726 = vmatprep.subr.mxu0 0.0
    %727 = vmatpush1.msra.mxu0 0.0
    %728 = vmatprep.subr.mxu0 0.0
    %729 = vmatpush1.msra.mxu0 0.0
    %730 = vmatprep.subr.mxu0 0.0
    %731 = vmatpush1.msra.mxu0 0.0
    %732 = vmatprep.subr.mxu0 0.0
    %733 = vmatpush1.msra.mxu0 0.0
    %734 = vmatprep.subr.mxu0 0.0
    %735 = vmatpush1.msra.mxu0 0.0
    %736 = vmatprep.subr.mxu0 0.0
    %737 = vmatpush1.msra.mxu0 0.0
    %738 = vmatprep.subr.mxu0 0.0
    %739 = vmatpush1.msra.mxu0 0.0
    %740 = vmatprep.subr.mxu0 0.0
    %741 = vmatpush1.msra.mxu0 0.0
    %742 = vmatprep.subr.mxu0 0.0
    %743 = vmatpush1.msra.mxu0 0.0
    %744 = vmatprep.mubr.f32.mxu0 0.0
    %745 = vmatmul.mubr.f32.gmra.mrb[0].mxu0 %v88
    %v746 = vpop.f32.mrb[0].mxu0
    %v747 = vadd.f32 %v69, %v746
    %v748 = vpop.f32.mrb[0].mxu0
    %749 = vmatprep.mubr.f32.mxu0 0.0
    %750 = vmatmul.mubr.f32.gmra.mrb[0].mxu0 %v91
    %v751 = vpop.f32.mrb[0].mxu0
    %v752 = vadd.f32 %v74, %v751
    %v753 = vpop.f32.mrb[0].mxu0
    %754 = vmatprep.mubr.f32.mxu0 0.0
    %755 = vmatmul.mubr.f32.gmra.mrb[0].mxu0 %v94
    %v756 = vpop.f32.mrb[0].mxu0
    %v757 = vadd.f32 %v79, %v756
    %v758 = vpop.f32.mrb[0].mxu0
    %759 = vmatprep.mubr.f32.mxu0 0.0
    %760 = vmatmul.mubr.f32.gmra.mrb[0].mxu0 %v97
    %v761 = vpop.f32.mrb[0].mxu0
    %v762 = vadd.f32 %v84, %v761
    %v763 = vpop.f32.mrb[0].mxu0
    %764 = vdwg.mxu0
    %v765 = vmax.f32 %v747, 0.0
    %v766 = vmax.f32 %v752, 0.0
    %v767 = vmax.f32 %v757, 0.0
    %v768 = vmax.f32 %v762, 0.0
    %769 = vmatprep.subr.mxu0 0.0
    %770 = vmatpush1.msra.mxu0 %v765
    %771 = vmatprep.subr.mxu0 0.0
    %772 = vmatpush1.msra.mxu0 %v766
    %773 = vmatprep.subr.mxu0 0.0
    %774 = vmatpush1.msra.mxu0 %v767
    %775 = vmatprep.subr.mxu0 0.0
    %776 = vmatpush1.msra.mxu0 %v768
    %777 = vmatprep.subr.mxu0 0.0
    %778 = vmatpush1.msra.mxu0 0.0
    %779 = vmatprep.subr.mxu0 0.0
    %780 = vmatpush1.msra.mxu0 0.0
    %781 = vmatprep.subr.mxu0 0.0
    %782 = vmatpush1.msra.mxu0 0.0
    %783 = vmatprep.subr.mxu0 0.0
    %784 = vmatpush1.msra.mxu0 0.0
    %785 = vmatprep.subr.mxu0 0.0
    %786 = vmatpush1.msra.mxu0 0.0
    %787 = vmatprep.subr.mxu0 0.0
    %788 = vmatpush1.msra.mxu0 0.0
    %789 = vmatprep.subr.mxu0 0.0
    %790 = vmatpush1.msra.mxu0 0.0
    %791 = vmatprep.subr.mxu0 0.0
    %792 = vmatpush1.msra.mxu0 0.0
    %793 = vmatprep.subr.mxu0 0.0
    %794 = vmatpush1.msra.mxu0 0.0
    %795 = vmatprep.subr.mxu0 0.0
    %796 = vmatpush1.msra.mxu0 0.0
    %797 = vmatprep.subr.mxu0 0.0
    %798 = vmatpush1.msra.mxu0 0.0
    %799 = vmatprep.subr.mxu0 0.0
    %800 = vmatpush1.msra.mxu0 0.0
    %801 = vmatprep.subr.mxu0 0.0
    %802 = vmatpush1.msra.mxu0 0.0
    %803 = vmatprep.subr.mxu0 0.0
    %804 = vmatpush1.msra.mxu0 0.0
    %805 = vmatprep.subr.mxu0 0.0
    %806 = vmatpush1.msra.mxu0 0.0
    %807 = vmatprep.subr.mxu0 0.0
    %808 = vmatpush1.msra.mxu0 0.0
    %809 = vmatprep.subr.mxu0 0.0
    %810 = vmatpush1.msra.mxu0 0.0
    %811 = vmatprep.subr.mxu0 0.0
    %812 = vmatpush1.msra.mxu0 0.0
    %813 = vmatprep.subr.mxu0 0.0
    %814 = vmatpush1.msra.mxu0 0.0
    %815 = vmatprep.subr.mxu0 0.0
    %816 = vmatpush1.msra.mxu0 0.0
    %817 = vmatprep.subr.mxu0 0.0
    %818 = vmatpush1.msra.mxu0 0.0
    %819 = vmatprep.subr.mxu0 0.0
    %820 = vmatpush1.msra.mxu0 0.0
    %821 = vmatprep.subr.mxu0 0.0
    %822 = vmatpush1.msra.mxu0 0.0
    %823 = vmatprep.subr.mxu0 0.0
    %824 = vmatpush1.msra.mxu0 0.0
    %825 = vmatprep.subr.mxu0 0.0
    %826 = vmatpush1.msra.mxu0 0.0
    %827 = vmatprep.subr.mxu0 0.0
    %828 = vmatpush1.msra.mxu0 0.0
    %829 = vmatprep.subr.mxu0 0.0
    %830 = vmatpush1.msra.mxu0 0.0
    %831 = vmatprep.subr.mxu0 0.0
    %832 = vmatpush1.msra.mxu0 0.0
    %833 = vmatprep.mubr.f32.mxu0 0.0
    %834 = vmatmul.mubr.f32.gmra.mrb[0].mxu0 %v210
    %v835 = vpop.f32.mrb[0].mxu0
    %v836 = vadd.f32 %v191, %v835
    %v837 = vpop.f32.mrb[0].mxu0
    %838 = vmatprep.mubr.f32.mxu0 0.0
    %839 = vmatmul.mubr.f32.gmra.mrb[0].mxu0 %v213
    %v840 = vpop.f32.mrb[0].mxu0
    %v841 = vadd.f32 %v196, %v840
    %v842 = vpop.f32.mrb[0].mxu0
    %843 = vmatprep.mubr.f32.mxu0 0.0
    %844 = vmatmul.mubr.f32.gmra.mrb[0].mxu0 %v216
    %v845 = vpop.f32.mrb[0].mxu0
    %v846 = vadd.f32 %v201, %v845
    %v847 = vpop.f32.mrb[0].mxu0
    %848 = vmatprep.mubr.f32.mxu0 0.0
    %849 = vmatmul.mubr.f32.gmra.mrb[0].mxu0 %v219
    %v850 = vpop.f32.mrb[0].mxu0
    %v851 = vadd.f32 %v206, %v850
    %v852 = vpop.f32.mrb[0].mxu0
    %853 = vdwg.mxu0
    %v854 = vmax.f32 %v836, 0.0
    %v855 = vmax.f32 %v841, 0.0
    %v856 = vmax.f32 %v846, 0.0
    %v857 = vmax.f32 %v851, 0.0
    %v858 = vmax.f32 %v674, %v854
    %v859 = vmax.f32 %v675, %v855
    %v860 = vmax.f32 %v676, %v856
    %v861 = vmax.f32 %v677, %v857
    %s862 = scalar_lea.vmem %s0, 32
    %v863 = vld [vmem:[%s862] sm:$0xff]
    %864 = vmatprep.subr.mxu0 0.0
    %865 = vmatpush1.msra.mxu0 %v863
    %866 = vmatprep.subr.mxu0 0.0
    %867 = vmatpush1.msra.mxu0 0.0
    %868 = vmatprep.subr.mxu0 0.0
    %869 = vmatpush1.msra.mxu0 0.0
    %870 = vmatprep.subr.mxu0 0.0
    %871 = vmatpush1.msra.mxu0 0.0
    %872 = vmatprep.subr.mxu0 0.0
    %873 = vmatpush1.msra.mxu0 0.0
    %874 = vmatprep.subr.mxu0 0.0
    %875 = vmatpush1.msra.mxu0 0.0
    %876 = vmatprep.subr.mxu0 0.0
    %877 = vmatpush1.msra.mxu0 0.0
    %878 = vmatprep.subr.mxu0 0.0
    %879 = vmatpush1.msra.mxu0 0.0
    %880 = vmatprep.subr.mxu0 0.0
    %881 = vmatpush1.msra.mxu0 0.0
    %882 = vmatprep.subr.mxu0 0.0
    %883 = vmatpush1.msra.mxu0 0.0
    %884 = vmatprep.subr.mxu0 0.0
    %885 = vmatpush1.msra.mxu0 0.0
    %886 = vmatprep.subr.mxu0 0.0
    %887 = vmatpush1.msra.mxu0 0.0
    %888 = vmatprep.subr.mxu0 0.0
    %889 = vmatpush1.msra.mxu0 0.0
    %890 = vmatprep.subr.mxu0 0.0
    %891 = vmatpush1.msra.mxu0 0.0
    %892 = vmatprep.subr.mxu0 0.0
    %893 = vmatpush1.msra.mxu0 0.0
    %894 = vmatprep.subr.mxu0 0.0
    %895 = vmatpush1.msra.mxu0 0.0
    %896 = vmatprep.subr.mxu0 0.0
    %897 = vmatpush1.msra.mxu0 0.0
    %898 = vmatprep.subr.mxu0 0.0
    %899 = vmatpush1.msra.mxu0 0.0
    %900 = vmatprep.subr.mxu0 0.0
    %901 = vmatpush1.msra.mxu0 0.0
    %902 = vmatprep.subr.mxu0 0.0
    %903 = vmatpush1.msra.mxu0 0.0
    %904 = vmatprep.subr.mxu0 0.0
    %905 = vmatpush1.msra.mxu0 0.0
    %906 = vmatprep.subr.mxu0 0.0
    %907 = vmatpush1.msra.mxu0 0.0
    %908 = vmatprep.subr.mxu0 0.0
    %909 = vmatpush1.msra.mxu0 0.0
    %910 = vmatprep.subr.mxu0 0.0
    %911 = vmatpush1.msra.mxu0 0.0
    %912 = vmatprep.subr.mxu0 0.0
    %913 = vmatpush1.msra.mxu0 0.0
    %914 = vmatprep.subr.mxu0 0.0
    %915 = vmatpush1.msra.mxu0 0.0
    %916 = vmatprep.subr.mxu0 0.0
    %917 = vmatpush1.msra.mxu0 0.0
    %918 = vmatprep.subr.mxu0 0.0
    %919 = vmatpush1.msra.mxu0 0.0
    %920 = vmatprep.subr.mxu0 0.0
    %921 = vmatpush1.msra.mxu0 0.0
    %922 = vmatprep.subr.mxu0 0.0
    %923 = vmatpush1.msra.mxu0 0.0
    %924 = vmatprep.subr.mxu0 0.0
    %925 = vmatpush1.msra.mxu0 0.0
    %926 = vmatprep.subr.mxu0 0.0
    %927 = vmatpush1.msra.mxu0 0.0
    %928 = vmatprep.mubr.f32.mxu0 0.0
    %929 = vmatmul.mubr.f32.gmra.mrb[0].mxu0 %v88
    %v930 = vpop.f32.mrb[0].mxu0
    %v931 = vadd.f32 %v69, %v930
    %v932 = vpop.f32.mrb[0].mxu0
    %933 = vmatprep.mubr.f32.mxu0 0.0
    %934 = vmatmul.mubr.f32.gmra.mrb[0].mxu0 %v91
    %v935 = vpop.f32.mrb[0].mxu0
    %v936 = vadd.f32 %v74, %v935
    %v937 = vpop.f32.mrb[0].mxu0
    %938 = vmatprep.mubr.f32.mxu0 0.0
    %939 = vmatmul.mubr.f32.gmra.mrb[0].mxu0 %v94
    %v940 = vpop.f32.mrb[0].mxu0
    %v941 = vadd.f32 %v79, %v940
    %v942 = vpop.f32.mrb[0].mxu0
    %943 = vmatprep.mubr.f32.mxu0 0.0
    %944 = vmatmul.mubr.f32.gmra.mrb[0].mxu0 %v97
    %v945 = vpop.f32.mrb[0].mxu0
    %v946 = vadd.f32 %v84, %v945
    %v947 = vpop.f32.mrb[0].mxu0
    %948 = vdwg.mxu0
    %v949 = vmax.f32 %v931, 0.0
    %v950 = vmax.f32 %v936, 0.0
    %v951 = vmax.f32 %v941, 0.0
    %v952 = vmax.f32 %v946, 0.0
    %953 = vmatprep.subr.mxu0 0.0
    %954 = vmatpush1.msra.mxu0 %v949
    %955 = vmatprep.subr.mxu0 0.0
    %956 = vmatpush1.msra.mxu0 %v950
    %957 = vmatprep.subr.mxu0 0.0
    %958 = vmatpush1.msra.mxu0 %v951
    %959 = vmatprep.subr.mxu0 0.0
    %960 = vmatpush1.msra.mxu0 %v952
    %961 = vmatprep.subr.mxu0 0.0
    %962 = vmatpush1.msra.mxu0 0.0
    %963 = vmatprep.subr.mxu0 0.0
    %964 = vmatpush1.msra.mxu0 0.0
    %965 = vmatprep.subr.mxu0 0.0
    %966 = vmatpush1.msra.mxu0 0.0
    %967 = vmatprep.subr.mxu0 0.0
    %968 = vmatpush1.msra.mxu0 0.0
    %969 = vmatprep.subr.mxu0 0.0
    %970 = vmatpush1.msra.mxu0 0.0
    %971 = vmatprep.subr.mxu0 0.0
    %972 = vmatpush1.msra.mxu0 0.0
    %973 = vmatprep.subr.mxu0 0.0
    %974 = vmatpush1.msra.mxu0 0.0
    %975 = vmatprep.subr.mxu0 0.0
    %976 = vmatpush1.msra.mxu0 0.0
    %977 = vmatprep.subr.mxu0 0.0
    %978 = vmatpush1.msra.mxu0 0.0
    %979 = vmatprep.subr.mxu0 0.0
    %980 = vmatpush1.msra.mxu0 0.0
    %981 = vmatprep.subr.mxu0 0.0
    %982 = vmatpush1.msra.mxu0 0.0
    %983 = vmatprep.subr.mxu0 0.0
    %984 = vmatpush1.msra.mxu0 0.0
    %985 = vmatprep.subr.mxu0 0.0
    %986 = vmatpush1.msra.mxu0 0.0
    %987 = vmatprep.subr.mxu0 0.0
    %988 = vmatpush1.msra.mxu0 0.0
    %989 = vmatprep.subr.mxu0 0.0
    %990 = vmatpush1.msra.mxu0 0.0
    %991 = vmatprep.subr.mxu0 0.0
    %992 = vmatpush1.msra.mxu0 0.0
    %993 = vmatprep.subr.mxu0 0.0
    %994 = vmatpush1.msra.mxu0 0.0
    %995 = vmatprep.subr.mxu0 0.0
    %996 = vmatpush1.msra.mxu0 0.0
    %997 = vmatprep.subr.mxu0 0.0
    %998 = vmatpush1.msra.mxu0 0.0
    %999 = vmatprep.subr.mxu0 0.0
    %1000 = vmatpush1.msra.mxu0 0.0
    %1001 = vmatprep.subr.mxu0 0.0
    %1002 = vmatpush1.msra.mxu0 0.0
    %1003 = vmatprep.subr.mxu0 0.0
    %1004 = vmatpush1.msra.mxu0 0.0
    %1005 = vmatprep.subr.mxu0 0.0
    %1006 = vmatpush1.msra.mxu0 0.0
    %1007 = vmatprep.subr.mxu0 0.0
    %1008 = vmatpush1.msra.mxu0 0.0
    %1009 = vmatprep.subr.mxu0 0.0
    %1010 = vmatpush1.msra.mxu0 0.0
    %1011 = vmatprep.subr.mxu0 0.0
    %1012 = vmatpush1.msra.mxu0 0.0
    %1013 = vmatprep.subr.mxu0 0.0
    %1014 = vmatpush1.msra.mxu0 0.0
    %1015 = vmatprep.subr.mxu0 0.0
    %1016 = vmatpush1.msra.mxu0 0.0
    %1017 = vmatprep.mubr.f32.mxu0 0.0
    %1018 = vmatmul.mubr.f32.gmra.mrb[0].mxu0 %v210
    %v1019 = vpop.f32.mrb[0].mxu0
    %v1020 = vadd.f32 %v191, %v1019
    %v1021 = vpop.f32.mrb[0].mxu0
    %1022 = vmatprep.mubr.f32.mxu0 0.0
    %1023 = vmatmul.mubr.f32.gmra.mrb[0].mxu0 %v213
    %v1024 = vpop.f32.mrb[0].mxu0
    %v1025 = vadd.f32 %v196, %v1024
    %v1026 = vpop.f32.mrb[0].mxu0
    %1027 = vmatprep.mubr.f32.mxu0 0.0
    %1028 = vmatmul.mubr.f32.gmra.mrb[0].mxu0 %v216
    %v1029 = vpop.f32.mrb[0].mxu0
    %v1030 = vadd.f32 %v201, %v1029
    %v1031 = vpop.f32.mrb[0].mxu0
    %1032 = vmatprep.mubr.f32.mxu0 0.0
    %1033 = vmatmul.mubr.f32.gmra.mrb[0].mxu0 %v219
    %v1034 = vpop.f32.mrb[0].mxu0
    %v1035 = vadd.f32 %v206, %v1034
    %v1036 = vpop.f32.mrb[0].mxu0
    %1037 = vdwg.mxu0
    %v1038 = vmax.f32 %v1020, 0.0
    %v1039 = vmax.f32 %v1025, 0.0
    %v1040 = vmax.f32 %v1030, 0.0
    %v1041 = vmax.f32 %v1035, 0.0
    %v1042 = vmax.f32 %v858, %v1038
    %v1043 = vmax.f32 %v859, %v1039
    %v1044 = vmax.f32 %v860, %v1040
    %v1045 = vmax.f32 %v861, %v1041
    %s1046 = scalar_lea.vmem %s0, 40
    %v1047 = vld [vmem:[%s1046] sm:$0xff]
    %1048 = vmatprep.subr.mxu0 0.0
    %1049 = vmatpush1.msra.mxu0 %v1047
    %1050 = vmatprep.subr.mxu0 0.0
    %1051 = vmatpush1.msra.mxu0 0.0
    %1052 = vmatprep.subr.mxu0 0.0
    %1053 = vmatpush1.msra.mxu0 0.0
    %1054 = vmatprep.subr.mxu0 0.0
    %1055 = vmatpush1.msra.mxu0 0.0
    %1056 = vmatprep.subr.mxu0 0.0
    %1057 = vmatpush1.msra.mxu0 0.0
    %1058 = vmatprep.subr.mxu0 0.0
    %1059 = vmatpush1.msra.mxu0 0.0
    %1060 = vmatprep.subr.mxu0 0.0
    %1061 = vmatpush1.msra.mxu0 0.0
    %1062 = vmatprep.subr.mxu0 0.0
    %1063 = vmatpush1.msra.mxu0 0.0
    %1064 = vmatprep.subr.mxu0 0.0
    %1065 = vmatpush1.msra.mxu0 0.0
    %1066 = vmatprep.subr.mxu0 0.0
    %1067 = vmatpush1.msra.mxu0 0.0
    %1068 = vmatprep.subr.mxu0 0.0
    %1069 = vmatpush1.msra.mxu0 0.0
    %1070 = vmatprep.subr.mxu0 0.0
    %1071 = vmatpush1.msra.mxu0 0.0
    %1072 = vmatprep.subr.mxu0 0.0
    %1073 = vmatpush1.msra.mxu0 0.0
    %1074 = vmatprep.subr.mxu0 0.0
    %1075 = vmatpush1.msra.mxu0 0.0
    %1076 = vmatprep.subr.mxu0 0.0
    %1077 = vmatpush1.msra.mxu0 0.0
    %1078 = vmatprep.subr.mxu0 0.0
    %1079 = vmatpush1.msra.mxu0 0.0
    %1080 = vmatprep.subr.mxu0 0.0
    %1081 = vmatpush1.msra.mxu0 0.0
    %1082 = vmatprep.subr.mxu0 0.0
    %1083 = vmatpush1.msra.mxu0 0.0
    %1084 = vmatprep.subr.mxu0 0.0
    %1085 = vmatpush1.msra.mxu0 0.0
    %1086 = vmatprep.subr.mxu0 0.0
    %1087 = vmatpush1.msra.mxu0 0.0
    %1088 = vmatprep.subr.mxu0 0.0
    %1089 = vmatpush1.msra.mxu0 0.0
    %1090 = vmatprep.subr.mxu0 0.0
    %1091 = vmatpush1.msra.mxu0 0.0
    %1092 = vmatprep.subr.mxu0 0.0
    %1093 = vmatpush1.msra.mxu0 0.0
    %1094 = vmatprep.subr.mxu0 0.0
    %1095 = vmatpush1.msra.mxu0 0.0
    %1096 = vmatprep.subr.mxu0 0.0
    %1097 = vmatpush1.msra.mxu0 0.0
    %1098 = vmatprep.subr.mxu0 0.0
    %1099 = vmatpush1.msra.mxu0 0.0
    %1100 = vmatprep.subr.mxu0 0.0
    %1101 = vmatpush1.msra.mxu0 0.0
    %1102 = vmatprep.subr.mxu0 0.0
    %1103 = vmatpush1.msra.mxu0 0.0
    %1104 = vmatprep.subr.mxu0 0.0
    %1105 = vmatpush1.msra.mxu0 0.0
    %1106 = vmatprep.subr.mxu0 0.0
    %1107 = vmatpush1.msra.mxu0 0.0
    %1108 = vmatprep.subr.mxu0 0.0
    %1109 = vmatpush1.msra.mxu0 0.0
    %1110 = vmatprep.subr.mxu0 0.0
    %1111 = vmatpush1.msra.mxu0 0.0
    %1112 = vmatprep.mubr.f32.mxu0 0.0
    %1113 = vmatmul.mubr.f32.gmra.mrb[0].mxu0 %v88
    %v1114 = vpop.f32.mrb[0].mxu0
    %v1115 = vadd.f32 %v69, %v1114
    %v1116 = vpop.f32.mrb[0].mxu0
    %1117 = vmatprep.mubr.f32.mxu0 0.0
    %1118 = vmatmul.mubr.f32.gmra.mrb[0].mxu0 %v91
    %v1119 = vpop.f32.mrb[0].mxu0
    %v1120 = vadd.f32 %v74, %v1119
    %v1121 = vpop.f32.mrb[0].mxu0
    %1122 = vmatprep.mubr.f32.mxu0 0.0
    %1123 = vmatmul.mubr.f32.gmra.mrb[0].mxu0 %v94
    %v1124 = vpop.f32.mrb[0].mxu0
    %v1125 = vadd.f32 %v79, %v1124
    %v1126 = vpop.f32.mrb[0].mxu0
    %1127 = vmatprep.mubr.f32.mxu0 0.0
    %1128 = vmatmul.mubr.f32.gmra.mrb[0].mxu0 %v97
    %v1129 = vpop.f32.mrb[0].mxu0
    %v1130 = vadd.f32 %v84, %v1129
    %v1131 = vpop.f32.mrb[0].mxu0
    %1132 = vdwg.mxu0
    %v1133 = vmax.f32 %v1115, 0.0
    %v1134 = vmax.f32 %v1120, 0.0
    %v1135 = vmax.f32 %v1125, 0.0
    %v1136 = vmax.f32 %v1130, 0.0
    %1137 = vmatprep.subr.mxu0 0.0
    %1138 = vmatpush1.msra.mxu0 %v1133
    %1139 = vmatprep.subr.mxu0 0.0
    %1140 = vmatpush1.msra.mxu0 %v1134
    %1141 = vmatprep.subr.mxu0 0.0
    %1142 = vmatpush1.msra.mxu0 %v1135
    %1143 = vmatprep.subr.mxu0 0.0
    %1144 = vmatpush1.msra.mxu0 %v1136
    %1145 = vmatprep.subr.mxu0 0.0
    %1146 = vmatpush1.msra.mxu0 0.0
    %1147 = vmatprep.subr.mxu0 0.0
    %1148 = vmatpush1.msra.mxu0 0.0
    %1149 = vmatprep.subr.mxu0 0.0
    %1150 = vmatpush1.msra.mxu0 0.0
    %1151 = vmatprep.subr.mxu0 0.0
    %1152 = vmatpush1.msra.mxu0 0.0
    %1153 = vmatprep.subr.mxu0 0.0
    %1154 = vmatpush1.msra.mxu0 0.0
    %1155 = vmatprep.subr.mxu0 0.0
    %1156 = vmatpush1.msra.mxu0 0.0
    %1157 = vmatprep.subr.mxu0 0.0
    %1158 = vmatpush1.msra.mxu0 0.0
    %1159 = vmatprep.subr.mxu0 0.0
    %1160 = vmatpush1.msra.mxu0 0.0
    %1161 = vmatprep.subr.mxu0 0.0
    %1162 = vmatpush1.msra.mxu0 0.0
    %1163 = vmatprep.subr.mxu0 0.0
    %1164 = vmatpush1.msra.mxu0 0.0
    %1165 = vmatprep.subr.mxu0 0.0
    %1166 = vmatpush1.msra.mxu0 0.0
    %1167 = vmatprep.subr.mxu0 0.0
    %1168 = vmatpush1.msra.mxu0 0.0
    %1169 = vmatprep.subr.mxu0 0.0
    %1170 = vmatpush1.msra.mxu0 0.0
    %1171 = vmatprep.subr.mxu0 0.0
    %1172 = vmatpush1.msra.mxu0 0.0
    %1173 = vmatprep.subr.mxu0 0.0
    %1174 = vmatpush1.msra.mxu0 0.0
    %1175 = vmatprep.subr.mxu0 0.0
    %1176 = vmatpush1.msra.mxu0 0.0
    %1177 = vmatprep.subr.mxu0 0.0
    %1178 = vmatpush1.msra.mxu0 0.0
    %1179 = vmatprep.subr.mxu0 0.0
    %1180 = vmatpush1.msra.mxu0 0.0
    %1181 = vmatprep.subr.mxu0 0.0
    %1182 = vmatpush1.msra.mxu0 0.0
    %1183 = vmatprep.subr.mxu0 0.0
    %1184 = vmatpush1.msra.mxu0 0.0
    %1185 = vmatprep.subr.mxu0 0.0
    %1186 = vmatpush1.msra.mxu0 0.0
    %1187 = vmatprep.subr.mxu0 0.0
    %1188 = vmatpush1.msra.mxu0 0.0
    %1189 = vmatprep.subr.mxu0 0.0
    %1190 = vmatpush1.msra.mxu0 0.0
    %1191 = vmatprep.subr.mxu0 0.0
    %1192 = vmatpush1.msra.mxu0 0.0
    %1193 = vmatprep.subr.mxu0 0.0
    %1194 = vmatpush1.msra.mxu0 0.0
    %1195 = vmatprep.subr.mxu0 0.0
    %1196 = vmatpush1.msra.mxu0 0.0
    %1197 = vmatprep.subr.mxu0 0.0
    %1198 = vmatpush1.msra.mxu0 0.0
    %1199 = vmatprep.subr.mxu0 0.0
    %1200 = vmatpush1.msra.mxu0 0.0
    %1201 = vmatprep.mubr.f32.mxu0 0.0
    %1202 = vmatmul.mubr.f32.gmra.mrb[0].mxu0 %v210
    %v1203 = vpop.f32.mrb[0].mxu0
    %v1204 = vadd.f32 %v191, %v1203
    %v1205 = vpop.f32.mrb[0].mxu0
    %1206 = vmatprep.mubr.f32.mxu0 0.0
    %1207 = vmatmul.mubr.f32.gmra.mrb[0].mxu0 %v213
    %v1208 = vpop.f32.mrb[0].mxu0
    %v1209 = vadd.f32 %v196, %v1208
    %v1210 = vpop.f32.mrb[0].mxu0
    %1211 = vmatprep.mubr.f32.mxu0 0.0
    %1212 = vmatmul.mubr.f32.gmra.mrb[0].mxu0 %v216
    %v1213 = vpop.f32.mrb[0].mxu0
    %v1214 = vadd.f32 %v201, %v1213
    %v1215 = vpop.f32.mrb[0].mxu0
    %1216 = vmatprep.mubr.f32.mxu0 0.0
    %1217 = vmatmul.mubr.f32.gmra.mrb[0].mxu0 %v219
    %v1218 = vpop.f32.mrb[0].mxu0
    %v1219 = vadd.f32 %v206, %v1218
    %v1220 = vpop.f32.mrb[0].mxu0
    %1221 = vdwg.mxu0
    %v1222 = vmax.f32 %v1204, 0.0
    %v1223 = vmax.f32 %v1209, 0.0
    %v1224 = vmax.f32 %v1214, 0.0
    %v1225 = vmax.f32 %v1219, 0.0
    %v1226 = vmax.f32 %v1042, %v1222
    %v1227 = vmax.f32 %v1043, %v1223
    %v1228 = vmax.f32 %v1044, %v1224
    %v1229 = vmax.f32 %v1045, %v1225
    %s1230 = scalar_lea.vmem %s0, 48
    %v1231 = vld [vmem:[%s1230] sm:$0xff]
    %1232 = vmatprep.subr.mxu0 0.0
    %1233 = vmatpush1.msra.mxu0 %v1231
    %1234 = vmatprep.subr.mxu0 0.0
    %1235 = vmatpush1.msra.mxu0 0.0
    %1236 = vmatprep.subr.mxu0 0.0
    %1237 = vmatpush1.msra.mxu0 0.0
    %1238 = vmatprep.subr.mxu0 0.0
    %1239 = vmatpush1.msra.mxu0 0.0
    %1240 = vmatprep.subr.mxu0 0.0
    %1241 = vmatpush1.msra.mxu0 0.0
    %1242 = vmatprep.subr.mxu0 0.0
    %1243 = vmatpush1.msra.mxu0 0.0
    %1244 = vmatprep.subr.mxu0 0.0
    %1245 = vmatpush1.msra.mxu0 0.0
    %1246 = vmatprep.subr.mxu0 0.0
    %1247 = vmatpush1.msra.mxu0 0.0
    %1248 = vmatprep.subr.mxu0 0.0
    %1249 = vmatpush1.msra.mxu0 0.0
    %1250 = vmatprep.subr.mxu0 0.0
    %1251 = vmatpush1.msra.mxu0 0.0
    %1252 = vmatprep.subr.mxu0 0.0
    %1253 = vmatpush1.msra.mxu0 0.0
    %1254 = vmatprep.subr.mxu0 0.0
    %1255 = vmatpush1.msra.mxu0 0.0
    %1256 = vmatprep.subr.mxu0 0.0
    %1257 = vmatpush1.msra.mxu0 0.0
    %1258 = vmatprep.subr.mxu0 0.0
    %1259 = vmatpush1.msra.mxu0 0.0
    %1260 = vmatprep.subr.mxu0 0.0
    %1261 = vmatpush1.msra.mxu0 0.0
    %1262 = vmatprep.subr.mxu0 0.0
    %1263 = vmatpush1.msra.mxu0 0.0
    %1264 = vmatprep.subr.mxu0 0.0
    %1265 = vmatpush1.msra.mxu0 0.0
    %1266 = vmatprep.subr.mxu0 0.0
    %1267 = vmatpush1.msra.mxu0 0.0
    %1268 = vmatprep.subr.mxu0 0.0
    %1269 = vmatpush1.msra.mxu0 0.0
    %1270 = vmatprep.subr.mxu0 0.0
    %1271 = vmatpush1.msra.mxu0 0.0
    %1272 = vmatprep.subr.mxu0 0.0
    %1273 = vmatpush1.msra.mxu0 0.0
    %1274 = vmatprep.subr.mxu0 0.0
    %1275 = vmatpush1.msra.mxu0 0.0
    %1276 = vmatprep.subr.mxu0 0.0
    %1277 = vmatpush1.msra.mxu0 0.0
    %1278 = vmatprep.subr.mxu0 0.0
    %1279 = vmatpush1.msra.mxu0 0.0
    %1280 = vmatprep.subr.mxu0 0.0
    %1281 = vmatpush1.msra.mxu0 0.0
    %1282 = vmatprep.subr.mxu0 0.0
    %1283 = vmatpush1.msra.mxu0 0.0
    %1284 = vmatprep.subr.mxu0 0.0
    %1285 = vmatpush1.msra.mxu0 0.0
    %1286 = vmatprep.subr.mxu0 0.0
    %1287 = vmatpush1.msra.mxu0 0.0
    %1288 = vmatprep.subr.mxu0 0.0
    %1289 = vmatpush1.msra.mxu0 0.0
    %1290 = vmatprep.subr.mxu0 0.0
    %1291 = vmatpush1.msra.mxu0 0.0
    %1292 = vmatprep.subr.mxu0 0.0
    %1293 = vmatpush1.msra.mxu0 0.0
    %1294 = vmatprep.subr.mxu0 0.0
    %1295 = vmatpush1.msra.mxu0 0.0
    %1296 = vmatprep.mubr.f32.mxu0 0.0
    %1297 = vmatmul.mubr.f32.gmra.mrb[0].mxu0 %v88
    %v1298 = vpop.f32.mrb[0].mxu0
    %v1299 = vadd.f32 %v69, %v1298
    %v1300 = vpop.f32.mrb[0].mxu0
    %1301 = vmatprep.mubr.f32.mxu0 0.0
    %1302 = vmatmul.mubr.f32.gmra.mrb[0].mxu0 %v91
    %v1303 = vpop.f32.mrb[0].mxu0
    %v1304 = vadd.f32 %v74, %v1303
    %v1305 = vpop.f32.mrb[0].mxu0
    %1306 = vmatprep.mubr.f32.mxu0 0.0
    %1307 = vmatmul.mubr.f32.gmra.mrb[0].mxu0 %v94
    %v1308 = vpop.f32.mrb[0].mxu0
    %v1309 = vadd.f32 %v79, %v1308
    %v1310 = vpop.f32.mrb[0].mxu0
    %1311 = vmatprep.mubr.f32.mxu0 0.0
    %1312 = vmatmul.mubr.f32.gmra.mrb[0].mxu0 %v97
    %v1313 = vpop.f32.mrb[0].mxu0
    %v1314 = vadd.f32 %v84, %v1313
    %v1315 = vpop.f32.mrb[0].mxu0
    %1316 = vdwg.mxu0
    %v1317 = vmax.f32 %v1299, 0.0
    %v1318 = vmax.f32 %v1304, 0.0
    %v1319 = vmax.f32 %v1309, 0.0
    %v1320 = vmax.f32 %v1314, 0.0
    %1321 = vmatprep.subr.mxu0 0.0
    %1322 = vmatpush1.msra.mxu0 %v1317
    %1323 = vmatprep.subr.mxu0 0.0
    %1324 = vmatpush1.msra.mxu0 %v1318
    %1325 = vmatprep.subr.mxu0 0.0
    %1326 = vmatpush1.msra.mxu0 %v1319
    %1327 = vmatprep.subr.mxu0 0.0
    %1328 = vmatpush1.msra.mxu0 %v1320
    %1329 = vmatprep.subr.mxu0 0.0
    %1330 = vmatpush1.msra.mxu0 0.0
    %1331 = vmatprep.subr.mxu0 0.0
    %1332 = vmatpush1.msra.mxu0 0.0
    %1333 = vmatprep.subr.mxu0 0.0
    %1334 = vmatpush1.msra.mxu0 0.0
    %1335 = vmatprep.subr.mxu0 0.0
    %1336 = vmatpush1.msra.mxu0 0.0
    %1337 = vmatprep.subr.mxu0 0.0
    %1338 = vmatpush1.msra.mxu0 0.0
    %1339 = vmatprep.subr.mxu0 0.0
    %1340 = vmatpush1.msra.mxu0 0.0
    %1341 = vmatprep.subr.mxu0 0.0
    %1342 = vmatpush1.msra.mxu0 0.0
    %1343 = vmatprep.subr.mxu0 0.0
    %1344 = vmatpush1.msra.mxu0 0.0
    %1345 = vmatprep.subr.mxu0 0.0
    %1346 = vmatpush1.msra.mxu0 0.0
    %1347 = vmatprep.subr.mxu0 0.0
    %1348 = vmatpush1.msra.mxu0 0.0
    %1349 = vmatprep.subr.mxu0 0.0
    %1350 = vmatpush1.msra.mxu0 0.0
    %1351 = vmatprep.subr.mxu0 0.0
    %1352 = vmatpush1.msra.mxu0 0.0
    %1353 = vmatprep.subr.mxu0 0.0
    %1354 = vmatpush1.msra.mxu0 0.0
    %1355 = vmatprep.subr.mxu0 0.0
    %1356 = vmatpush1.msra.mxu0 0.0
    %1357 = vmatprep.subr.mxu0 0.0
    %1358 = vmatpush1.msra.mxu0 0.0
    %1359 = vmatprep.subr.mxu0 0.0
    %1360 = vmatpush1.msra.mxu0 0.0
    %1361 = vmatprep.subr.mxu0 0.0
    %1362 = vmatpush1.msra.mxu0 0.0
    %1363 = vmatprep.subr.mxu0 0.0
    %1364 = vmatpush1.msra.mxu0 0.0
    %1365 = vmatprep.subr.mxu0 0.0
    %1366 = vmatpush1.msra.mxu0 0.0
    %1367 = vmatprep.subr.mxu0 0.0
    %1368 = vmatpush1.msra.mxu0 0.0
    %1369 = vmatprep.subr.mxu0 0.0
    %1370 = vmatpush1.msra.mxu0 0.0
    %1371 = vmatprep.subr.mxu0 0.0
    %1372 = vmatpush1.msra.mxu0 0.0
    %1373 = vmatprep.subr.mxu0 0.0
    %1374 = vmatpush1.msra.mxu0 0.0
    %1375 = vmatprep.subr.mxu0 0.0
    %1376 = vmatpush1.msra.mxu0 0.0
    %1377 = vmatprep.subr.mxu0 0.0
    %1378 = vmatpush1.msra.mxu0 0.0
    %1379 = vmatprep.subr.mxu0 0.0
    %1380 = vmatpush1.msra.mxu0 0.0
    %1381 = vmatprep.subr.mxu0 0.0
    %1382 = vmatpush1.msra.mxu0 0.0
    %1383 = vmatprep.subr.mxu0 0.0
    %1384 = vmatpush1.msra.mxu0 0.0
    %1385 = vmatprep.mubr.f32.mxu0 0.0
    %1386 = vmatmul.mubr.f32.gmra.mrb[0].mxu0 %v210
    %v1387 = vpop.f32.mrb[0].mxu0
    %v1388 = vadd.f32 %v191, %v1387
    %v1389 = vpop.f32.mrb[0].mxu0
    %1390 = vmatprep.mubr.f32.mxu0 0.0
    %1391 = vmatmul.mubr.f32.gmra.mrb[0].mxu0 %v213
    %v1392 = vpop.f32.mrb[0].mxu0
    %v1393 = vadd.f32 %v196, %v1392
    %v1394 = vpop.f32.mrb[0].mxu0
    %1395 = vmatprep.mubr.f32.mxu0 0.0
    %1396 = vmatmul.mubr.f32.gmra.mrb[0].mxu0 %v216
    %v1397 = vpop.f32.mrb[0].mxu0
    %v1398 = vadd.f32 %v201, %v1397
    %v1399 = vpop.f32.mrb[0].mxu0
    %1400 = vmatprep.mubr.f32.mxu0 0.0
    %1401 = vmatmul.mubr.f32.gmra.mrb[0].mxu0 %v219
    %v1402 = vpop.f32.mrb[0].mxu0
    %v1403 = vadd.f32 %v206, %v1402
    %v1404 = vpop.f32.mrb[0].mxu0
    %1405 = vdwg.mxu0
    %v1406 = vmax.f32 %v1388, 0.0
    %v1407 = vmax.f32 %v1393, 0.0
    %v1408 = vmax.f32 %v1398, 0.0
    %v1409 = vmax.f32 %v1403, 0.0
    %v1410 = vmax.f32 %v1226, %v1406
    %v1411 = vmax.f32 %v1227, %v1407
    %v1412 = vmax.f32 %v1228, %v1408
    %v1413 = vmax.f32 %v1229, %v1409
    %s1414 = scalar_lea.vmem %s0, 56
    %v1415 = vld [vmem:[%s1414] sm:$0xff]
    %1416 = vmatprep.subr.mxu0 0.0
    %1417 = vmatpush1.msra.mxu0 %v1415
    %1418 = vmatprep.subr.mxu0 0.0
    %1419 = vmatpush1.msra.mxu0 0.0
    %1420 = vmatprep.subr.mxu0 0.0
    %1421 = vmatpush1.msra.mxu0 0.0
    %1422 = vmatprep.subr.mxu0 0.0
    %1423 = vmatpush1.msra.mxu0 0.0
    %1424 = vmatprep.subr.mxu0 0.0
    %1425 = vmatpush1.msra.mxu0 0.0
    %1426 = vmatprep.subr.mxu0 0.0
    %1427 = vmatpush1.msra.mxu0 0.0
    %1428 = vmatprep.subr.mxu0 0.0
    %1429 = vmatpush1.msra.mxu0 0.0
    %1430 = vmatprep.subr.mxu0 0.0
    %1431 = vmatpush1.msra.mxu0 0.0
    %1432 = vmatprep.subr.mxu0 0.0
    %1433 = vmatpush1.msra.mxu0 0.0
    %1434 = vmatprep.subr.mxu0 0.0
    %1435 = vmatpush1.msra.mxu0 0.0
    %1436 = vmatprep.subr.mxu0 0.0
    %1437 = vmatpush1.msra.mxu0 0.0
    %1438 = vmatprep.subr.mxu0 0.0
    %1439 = vmatpush1.msra.mxu0 0.0
    %1440 = vmatprep.subr.mxu0 0.0
    %1441 = vmatpush1.msra.mxu0 0.0
    %1442 = vmatprep.subr.mxu0 0.0
    %1443 = vmatpush1.msra.mxu0 0.0
    %1444 = vmatprep.subr.mxu0 0.0
    %1445 = vmatpush1.msra.mxu0 0.0
    %1446 = vmatprep.subr.mxu0 0.0
    %1447 = vmatpush1.msra.mxu0 0.0
    %1448 = vmatprep.subr.mxu0 0.0
    %1449 = vmatpush1.msra.mxu0 0.0
    %1450 = vmatprep.subr.mxu0 0.0
    %1451 = vmatpush1.msra.mxu0 0.0
    %1452 = vmatprep.subr.mxu0 0.0
    %1453 = vmatpush1.msra.mxu0 0.0
    %1454 = vmatprep.subr.mxu0 0.0
    %1455 = vmatpush1.msra.mxu0 0.0
    %1456 = vmatprep.subr.mxu0 0.0
    %1457 = vmatpush1.msra.mxu0 0.0
    %1458 = vmatprep.subr.mxu0 0.0
    %1459 = vmatpush1.msra.mxu0 0.0
    %1460 = vmatprep.subr.mxu0 0.0
    %1461 = vmatpush1.msra.mxu0 0.0
    %1462 = vmatprep.subr.mxu0 0.0
    %1463 = vmatpush1.msra.mxu0 0.0
    %1464 = vmatprep.subr.mxu0 0.0
    %1465 = vmatpush1.msra.mxu0 0.0
    %1466 = vmatprep.subr.mxu0 0.0
    %1467 = vmatpush1.msra.mxu0 0.0
    %1468 = vmatprep.subr.mxu0 0.0
    %1469 = vmatpush1.msra.mxu0 0.0
    %1470 = vmatprep.subr.mxu0 0.0
    %1471 = vmatpush1.msra.mxu0 0.0
    %1472 = vmatprep.subr.mxu0 0.0
    %1473 = vmatpush1.msra.mxu0 0.0
    %1474 = vmatprep.subr.mxu0 0.0
    %1475 = vmatpush1.msra.mxu0 0.0
    %1476 = vmatprep.subr.mxu0 0.0
    %1477 = vmatpush1.msra.mxu0 0.0
    %1478 = vmatprep.subr.mxu0 0.0
    %1479 = vmatpush1.msra.mxu0 0.0
    %1480 = vmatprep.mubr.f32.mxu0 0.0
    %1481 = vmatmul.mubr.f32.gmra.mrb[0].mxu0 %v88
    %v1482 = vpop.f32.mrb[0].mxu0
    %v1483 = vadd.f32 %v69, %v1482
    %v1484 = vpop.f32.mrb[0].mxu0
    %1485 = vmatprep.mubr.f32.mxu0 0.0
    %1486 = vmatmul.mubr.f32.gmra.mrb[0].mxu0 %v91
    %v1487 = vpop.f32.mrb[0].mxu0
    %v1488 = vadd.f32 %v74, %v1487
    %v1489 = vpop.f32.mrb[0].mxu0
    %1490 = vmatprep.mubr.f32.mxu0 0.0
    %1491 = vmatmul.mubr.f32.gmra.mrb[0].mxu0 %v94
    %v1492 = vpop.f32.mrb[0].mxu0
    %v1493 = vadd.f32 %v79, %v1492
    %v1494 = vpop.f32.mrb[0].mxu0
    %1495 = vmatprep.mubr.f32.mxu0 0.0
    %1496 = vmatmul.mubr.f32.gmra.mrb[0].mxu0 %v97
    %v1497 = vpop.f32.mrb[0].mxu0
    %v1498 = vadd.f32 %v84, %v1497
    %v1499 = vpop.f32.mrb[0].mxu0
    %1500 = vdwg.mxu0
    %v1501 = vmax.f32 %v1483, 0.0
    %v1502 = vmax.f32 %v1488, 0.0
    %v1503 = vmax.f32 %v1493, 0.0
    %v1504 = vmax.f32 %v1498, 0.0
    %1505 = vmatprep.subr.mxu0 0.0
    %1506 = vmatpush1.msra.mxu0 %v1501
    %1507 = vmatprep.subr.mxu0 0.0
    %1508 = vmatpush1.msra.mxu0 %v1502
    %1509 = vmatprep.subr.mxu0 0.0
    %1510 = vmatpush1.msra.mxu0 %v1503
    %1511 = vmatprep.subr.mxu0 0.0
    %1512 = vmatpush1.msra.mxu0 %v1504
    %1513 = vmatprep.subr.mxu0 0.0
    %1514 = vmatpush1.msra.mxu0 0.0
    %1515 = vmatprep.subr.mxu0 0.0
    %1516 = vmatpush1.msra.mxu0 0.0
    %1517 = vmatprep.subr.mxu0 0.0
    %1518 = vmatpush1.msra.mxu0 0.0
    %1519 = vmatprep.subr.mxu0 0.0
    %1520 = vmatpush1.msra.mxu0 0.0
    %1521 = vmatprep.subr.mxu0 0.0
    %1522 = vmatpush1.msra.mxu0 0.0
    %1523 = vmatprep.subr.mxu0 0.0
    %1524 = vmatpush1.msra.mxu0 0.0
    %1525 = vmatprep.subr.mxu0 0.0
    %1526 = vmatpush1.msra.mxu0 0.0
    %1527 = vmatprep.subr.mxu0 0.0
    %1528 = vmatpush1.msra.mxu0 0.0
    %1529 = vmatprep.subr.mxu0 0.0
    %1530 = vmatpush1.msra.mxu0 0.0
    %1531 = vmatprep.subr.mxu0 0.0
    %1532 = vmatpush1.msra.mxu0 0.0
    %1533 = vmatprep.subr.mxu0 0.0
    %1534 = vmatpush1.msra.mxu0 0.0
    %1535 = vmatprep.subr.mxu0 0.0
    %1536 = vmatpush1.msra.mxu0 0.0
    %1537 = vmatprep.subr.mxu0 0.0
    %1538 = vmatpush1.msra.mxu0 0.0
    %1539 = vmatprep.subr.mxu0 0.0
    %1540 = vmatpush1.msra.mxu0 0.0
    %1541 = vmatprep.subr.mxu0 0.0
    %1542 = vmatpush1.msra.mxu0 0.0
    %1543 = vmatprep.subr.mxu0 0.0
    %1544 = vmatpush1.msra.mxu0 0.0
    %1545 = vmatprep.subr.mxu0 0.0
    %1546 = vmatpush1.msra.mxu0 0.0
    %1547 = vmatprep.subr.mxu0 0.0
    %1548 = vmatpush1.msra.mxu0 0.0
    %1549 = vmatprep.subr.mxu0 0.0
    %1550 = vmatpush1.msra.mxu0 0.0
    %1551 = vmatprep.subr.mxu0 0.0
    %1552 = vmatpush1.msra.mxu0 0.0
    %1553 = vmatprep.subr.mxu0 0.0
    %1554 = vmatpush1.msra.mxu0 0.0
    %1555 = vmatprep.subr.mxu0 0.0
    %1556 = vmatpush1.msra.mxu0 0.0
    %1557 = vmatprep.subr.mxu0 0.0
    %1558 = vmatpush1.msra.mxu0 0.0
    %1559 = vmatprep.subr.mxu0 0.0
    %1560 = vmatpush1.msra.mxu0 0.0
    %1561 = vmatprep.subr.mxu0 0.0
    %1562 = vmatpush1.msra.mxu0 0.0
    %1563 = vmatprep.subr.mxu0 0.0
    %1564 = vmatpush1.msra.mxu0 0.0
    %1565 = vmatprep.subr.mxu0 0.0
    %1566 = vmatpush1.msra.mxu0 0.0
    %1567 = vmatprep.subr.mxu0 0.0
    %1568 = vmatpush1.msra.mxu0 0.0
    %1569 = vmatprep.mubr.f32.mxu0 0.0
    %1570 = vmatmul.mubr.f32.gmra.mrb[0].mxu0 %v210
    %v1571 = vpop.f32.mrb[0].mxu0
    %v1572 = vadd.f32 %v191, %v1571
    %v1573 = vpop.f32.mrb[0].mxu0
    %1574 = vmatprep.mubr.f32.mxu0 0.0
    %1575 = vmatmul.mubr.f32.gmra.mrb[0].mxu0 %v213
    %v1576 = vpop.f32.mrb[0].mxu0
    %v1577 = vadd.f32 %v196, %v1576
    %v1578 = vpop.f32.mrb[0].mxu0
    %1579 = vmatprep.mubr.f32.mxu0 0.0
    %1580 = vmatmul.mubr.f32.gmra.mrb[0].mxu0 %v216
    %v1581 = vpop.f32.mrb[0].mxu0
    %v1582 = vadd.f32 %v201, %v1581
    %v1583 = vpop.f32.mrb[0].mxu0
    %1584 = vmatprep.mubr.f32.mxu0 0.0
    %1585 = vmatmul.mubr.f32.gmra.mrb[0].mxu0 %v219
    %v1586 = vpop.f32.mrb[0].mxu0
    %v1587 = vadd.f32 %v206, %v1586
    %v1588 = vpop.f32.mrb[0].mxu0
    %1589 = vdwg.mxu0
    %v1590 = vmax.f32 %v1572, 0.0
    %v1591 = vmax.f32 %v1577, 0.0
    %v1592 = vmax.f32 %v1582, 0.0
    %v1593 = vmax.f32 %v1587, 0.0
    %v1594 = vmax.f32 %v1410, %v1590
    %v1595 = vmax.f32 %v1411, %v1591
    %v1596 = vmax.f32 %v1412, %v1592
    %v1597 = vmax.f32 %v1413, %v1593
    %1599 = vset.pattern.permute.xlu0 0
    %1600 = vperm.xlu0 %1599, %v53
    %v1601 = vpop.permute.xlu0 %1600
    %1604 = vset.pattern.permute.xlu0 0
    %1605 = vperm.xlu0 %1604, %v54
    %v1606 = vpop.permute.xlu0 %1605
    %1609 = vset.pattern.permute.xlu0 0
    %1610 = vperm.xlu0 %1609, %v55
    %v1611 = vpop.permute.xlu0 %1610
    %1614 = vset.pattern.permute.xlu0 0
    %1615 = vperm.xlu0 %1614, %v56
    %v1616 = vpop.permute.xlu0 %1615
    %v1619 = vsel %vm208, %v49, 0
    %v1622 = vsel %vm208, %v50, 0
    %v1625 = vsel %vm208, %v51, 0
    %v1628 = vsel %vm208, %v52, 0
    %1630 = vmatprep.subr.mxu0 0.0
    %1631 = vmatpush1.msra.mxu0 %v1594
    %1632 = vmatprep.subr.mxu0 0.0
    %1633 = vmatpush1.msra.mxu0 %v1595
    %1634 = vmatprep.subr.mxu0 0.0
    %1635 = vmatpush1.msra.mxu0 %v1596
    %1636 = vmatprep.subr.mxu0 0.0
    %1637 = vmatpush1.msra.mxu0 %v1597
    %1638 = vmatprep.subr.mxu0 0.0
    %1639 = vmatpush1.msra.mxu0 0.0
    %1640 = vmatprep.subr.mxu0 0.0
    %1641 = vmatpush1.msra.mxu0 0.0
    %1642 = vmatprep.subr.mxu0 0.0
    %1643 = vmatpush1.msra.mxu0 0.0
    %1644 = vmatprep.subr.mxu0 0.0
    %1645 = vmatpush1.msra.mxu0 0.0
    %1646 = vmatprep.subr.mxu0 0.0
    %1647 = vmatpush1.msra.mxu0 0.0
    %1648 = vmatprep.subr.mxu0 0.0
    %1649 = vmatpush1.msra.mxu0 0.0
    %1650 = vmatprep.subr.mxu0 0.0
    %1651 = vmatpush1.msra.mxu0 0.0
    %1652 = vmatprep.subr.mxu0 0.0
    %1653 = vmatpush1.msra.mxu0 0.0
    %1654 = vmatprep.subr.mxu0 0.0
    %1655 = vmatpush1.msra.mxu0 0.0
    %1656 = vmatprep.subr.mxu0 0.0
    %1657 = vmatpush1.msra.mxu0 0.0
    %1658 = vmatprep.subr.mxu0 0.0
    %1659 = vmatpush1.msra.mxu0 0.0
    %1660 = vmatprep.subr.mxu0 0.0
    %1661 = vmatpush1.msra.mxu0 0.0
    %1662 = vmatprep.subr.mxu0 0.0
    %1663 = vmatpush1.msra.mxu0 0.0
    %1664 = vmatprep.subr.mxu0 0.0
    %1665 = vmatpush1.msra.mxu0 0.0
    %1666 = vmatprep.subr.mxu0 0.0
    %1667 = vmatpush1.msra.mxu0 0.0
    %1668 = vmatprep.subr.mxu0 0.0
    %1669 = vmatpush1.msra.mxu0 0.0
    %1670 = vmatprep.subr.mxu0 0.0
    %1671 = vmatpush1.msra.mxu0 0.0
    %1672 = vmatprep.subr.mxu0 0.0
    %1673 = vmatpush1.msra.mxu0 0.0
    %1674 = vmatprep.subr.mxu0 0.0
    %1675 = vmatpush1.msra.mxu0 0.0
    %1676 = vmatprep.subr.mxu0 0.0
    %1677 = vmatpush1.msra.mxu0 0.0
    %1678 = vmatprep.subr.mxu0 0.0
    %1679 = vmatpush1.msra.mxu0 0.0
    %1680 = vmatprep.subr.mxu0 0.0
    %1681 = vmatpush1.msra.mxu0 0.0
    %1682 = vmatprep.subr.mxu0 0.0
    %1683 = vmatpush1.msra.mxu0 0.0
    %1684 = vmatprep.subr.mxu0 0.0
    %1685 = vmatpush1.msra.mxu0 0.0
    %1686 = vmatprep.subr.mxu0 0.0
    %1687 = vmatpush1.msra.mxu0 0.0
    %1688 = vmatprep.subr.mxu0 0.0
    %1689 = vmatpush1.msra.mxu0 0.0
    %1690 = vmatprep.subr.mxu0 0.0
    %1691 = vmatpush1.msra.mxu0 0.0
    %1692 = vmatprep.subr.mxu0 0.0
    %1693 = vmatpush1.msra.mxu0 0.0
    %1694 = vmatprep.mubr.f32.mxu0 0.0
    %1695 = vmatmul.mubr.f32.gmra.mrb[0].mxu0 %v1619
    %v1696 = vpop.f32.mrb[0].mxu0
    %v1697 = vadd.f32 %v1601, %v1696
    %v1698 = vpop.f32.mrb[0].mxu0
    %1699 = vmatprep.mubr.f32.mxu0 0.0
    %1700 = vmatmul.mubr.f32.gmra.mrb[0].mxu0 %v1622
    %v1701 = vpop.f32.mrb[0].mxu0
    %v1702 = vadd.f32 %v1606, %v1701
    %v1703 = vpop.f32.mrb[0].mxu0
    %1704 = vmatprep.mubr.f32.mxu0 0.0
    %1705 = vmatmul.mubr.f32.gmra.mrb[0].mxu0 %v1625
    %v1706 = vpop.f32.mrb[0].mxu0
    %v1707 = vadd.f32 %v1611, %v1706
    %v1708 = vpop.f32.mrb[0].mxu0
    %1709 = vmatprep.mubr.f32.mxu0 0.0
    %1710 = vmatmul.mubr.f32.gmra.mrb[0].mxu0 %v1628
    %v1711 = vpop.f32.mrb[0].mxu0
    %v1712 = vadd.f32 %v1616, %v1711
    %v1713 = vpop.f32.mrb[0].mxu0
    %1714 = vdwg.mxu0
    %v1715 = vmax.f32 %v1697, 0.0
    %v1716 = vmax.f32 %v1702, 0.0
    %v1717 = vmax.f32 %v1707, 0.0
    %v1718 = vmax.f32 %v1712, 0.0
    %1720 = vset.pattern.permute.xlu0 0
    %1721 = vperm.xlu0 %1720, %v61
    %v1722 = vpop.permute.xlu0 %1721
    %1725 = vset.pattern.permute.xlu0 0
    %1726 = vperm.xlu0 %1725, %v62
    %v1727 = vpop.permute.xlu0 %1726
    %1730 = vset.pattern.permute.xlu0 0
    %1731 = vperm.xlu0 %1730, %v63
    %v1732 = vpop.permute.xlu0 %1731
    %1735 = vset.pattern.permute.xlu0 0
    %1736 = vperm.xlu0 %1735, %v64
    %v1737 = vpop.permute.xlu0 %1736
    %v1740 = vsel %vm208, %v57, 0
    %v1743 = vsel %vm208, %v58, 0
    %v1746 = vsel %vm208, %v59, 0
    %v1749 = vsel %vm208, %v60, 0
    %1751 = vmatprep.subr.mxu0 0.0
    %1752 = vmatpush1.msra.mxu0 %v1715
    %1753 = vmatprep.subr.mxu0 0.0
    %1754 = vmatpush1.msra.mxu0 %v1716
    %1755 = vmatprep.subr.mxu0 0.0
    %1756 = vmatpush1.msra.mxu0 %v1717
    %1757 = vmatprep.subr.mxu0 0.0
    %1758 = vmatpush1.msra.mxu0 %v1718
    %1759 = vmatprep.subr.mxu0 0.0
    %1760 = vmatpush1.msra.mxu0 0.0
    %1761 = vmatprep.subr.mxu0 0.0
    %1762 = vmatpush1.msra.mxu0 0.0
    %1763 = vmatprep.subr.mxu0 0.0
    %1764 = vmatpush1.msra.mxu0 0.0
    %1765 = vmatprep.subr.mxu0 0.0
    %1766 = vmatpush1.msra.mxu0 0.0
    %1767 = vmatprep.subr.mxu0 0.0
    %1768 = vmatpush1.msra.mxu0 0.0
    %1769 = vmatprep.subr.mxu0 0.0
    %1770 = vmatpush1.msra.mxu0 0.0
    %1771 = vmatprep.subr.mxu0 0.0
    %1772 = vmatpush1.msra.mxu0 0.0
    %1773 = vmatprep.subr.mxu0 0.0
    %1774 = vmatpush1.msra.mxu0 0.0
    %1775 = vmatprep.subr.mxu0 0.0
    %1776 = vmatpush1.msra.mxu0 0.0
    %1777 = vmatprep.subr.mxu0 0.0
    %1778 = vmatpush1.msra.mxu0 0.0
    %1779 = vmatprep.subr.mxu0 0.0
    %1780 = vmatpush1.msra.mxu0 0.0
    %1781 = vmatprep.subr.mxu0 0.0
    %1782 = vmatpush1.msra.mxu0 0.0
    %1783 = vmatprep.subr.mxu0 0.0
    %1784 = vmatpush1.msra.mxu0 0.0
    %1785 = vmatprep.subr.mxu0 0.0
    %1786 = vmatpush1.msra.mxu0 0.0
    %1787 = vmatprep.subr.mxu0 0.0
    %1788 = vmatpush1.msra.mxu0 0.0
    %1789 = vmatprep.subr.mxu0 0.0
    %1790 = vmatpush1.msra.mxu0 0.0
    %1791 = vmatprep.subr.mxu0 0.0
    %1792 = vmatpush1.msra.mxu0 0.0
    %1793 = vmatprep.subr.mxu0 0.0
    %1794 = vmatpush1.msra.mxu0 0.0
    %1795 = vmatprep.subr.mxu0 0.0
    %1796 = vmatpush1.msra.mxu0 0.0
    %1797 = vmatprep.subr.mxu0 0.0
    %1798 = vmatpush1.msra.mxu0 0.0
    %1799 = vmatprep.subr.mxu0 0.0
    %1800 = vmatpush1.msra.mxu0 0.0
    %1801 = vmatprep.subr.mxu0 0.0
    %1802 = vmatpush1.msra.mxu0 0.0
    %1803 = vmatprep.subr.mxu0 0.0
    %1804 = vmatpush1.msra.mxu0 0.0
    %1805 = vmatprep.subr.mxu0 0.0
    %1806 = vmatpush1.msra.mxu0 0.0
    %1807 = vmatprep.subr.mxu0 0.0
    %1808 = vmatpush1.msra.mxu0 0.0
    %1809 = vmatprep.subr.mxu0 0.0
    %1810 = vmatpush1.msra.mxu0 0.0
    %1811 = vmatprep.subr.mxu0 0.0
    %1812 = vmatpush1.msra.mxu0 0.0
    %1813 = vmatprep.subr.mxu0 0.0
    %1814 = vmatpush1.msra.mxu0 0.0
    %1815 = vmatprep.mubr.f32.mxu0 0.0
    %1816 = vmatmul.mubr.f32.gmra.mrb[0].mxu0 %v1740
    %v1817 = vpop.f32.mrb[0].mxu0
    %v1818 = vadd.f32 %v1722, %v1817
    %v1819 = vpop.f32.mrb[0].mxu0
    %1820 = vmatprep.mubr.f32.mxu0 0.0
    %1821 = vmatmul.mubr.f32.gmra.mrb[0].mxu0 %v1743
    %v1822 = vpop.f32.mrb[0].mxu0
    %v1823 = vadd.f32 %v1727, %v1822
    %v1824 = vpop.f32.mrb[0].mxu0
    %1825 = vmatprep.mubr.f32.mxu0 0.0
    %1826 = vmatmul.mubr.f32.gmra.mrb[0].mxu0 %v1746
    %v1827 = vpop.f32.mrb[0].mxu0
    %v1828 = vadd.f32 %v1732, %v1827
    %v1829 = vpop.f32.mrb[0].mxu0
    %1830 = vmatprep.mubr.f32.mxu0 0.0
    %1831 = vmatmul.mubr.f32.gmra.mrb[0].mxu0 %v1749
    %v1832 = vpop.f32.mrb[0].mxu0
    %v1833 = vadd.f32 %v1737, %v1832
    %v1834 = vpop.f32.mrb[0].mxu0
    %1835 = vdwg.mxu0
    %v1836 = vmax.f32 %v1818, 0.0
    %v1837 = vmax.f32 %v1823, 0.0
    %v1838 = vmax.f32 %v1828, 0.0
    %v1839 = vmax.f32 %v1833, 0.0
    %1840 = vst [vmem:[#allocation2] sm:$0xff] %v1836
    %1841 = vst [vmem:[#allocation2 + $0x8] sm:$0xff] %v1837
    %1842 = vst [vmem:[#allocation2 + $0x10] sm:$0xff] %v1838
    %1843 = vst [vmem:[#allocation2 + $0x18] sm:$0xff] %v1839
    // Predicated region
    $region38: #{tpu_custom_call.1} parent=1 // pred_check
      _
    $region39: #{tpu_custom_call.1} parent=1 // pred_check_branch
      %1845 = sbr.rel (0) target = $region41
    $region40: #{tpu_custom_call.1} parent=1 // pred_region
      %s1847 = ssub.s32 512, 512
      %1848 = vsyncadd [#allocation3], %s1847
      %s1849 = sshll.u32 [#allocation2], 4
      %s1850 = int_to_ptr.vmem [resolvable:$true] %s1849
      %1855 = dma.vmem_to_hbm [thread:$0]  %s1850, 512, %s9, [#allocation3], 128, 128, 8
    $region41: #{tpu_custom_call.1} parent=1 // pred_fallthru
      _
    // Predicated region
    $region42: #{tpu_custom_call.1} parent=1 // pred_check
      _
    $region43: #{tpu_custom_call.1} parent=1 // pred_check_branch
      %1857 = sbr.rel (0) target = $region45
    $region44: #{tpu_custom_call.1} parent=1 // pred_region
      %1858 = dma.done [#allocation3], 512
    $region45: #{tpu_custom_call.1} parent=1 // pred_fallthru
      _
    %1859 = vsyncpa [#allocation3], 1

</llo_original>
